<compile_context>
chip_gen: v6e
topology: v6e:2x2x1
jax: 0.10.0
libtpu: 0.0.40
codegen_flags: <defaults>
</compile_context>

<pallas_src>
import functools

import jax
import jax.numpy as jnp
from jax.experimental import pallas as pl
from jax.experimental.pallas import tpu as pltpu


# -----------------------------------------------------------------------------
# Helpers
# -----------------------------------------------------------------------------
def _round_up(x, m):
    return ((x + m - 1) // m) * m


def _largest_divisor(n, cap):
    """Largest divisor of n that is <= cap (falls back to 1)."""
    for d in range(min(n, cap), 0, -1):
        if n % d == 0:
            return d
    return n


def _vmem_limit(nbytes):
    # Explicit scoped-VMEM budget with slack; capped at 48 MiB (not 64) so the
    # kernel still leaves compiler-scratch headroom on v7x's 64 MiB VMEM.
    return int(min(48 * 1024 * 1024, max(8 * 1024 * 1024, nbytes + (2 << 20))))


# -----------------------------------------------------------------------------
# Kernel 1: 3x3 conv (stride 1, bias-free) + per-block per-channel sum / sumsq
# -----------------------------------------------------------------------------
def _conv3x3_kernel(xp_ref, w_ref, o_ref, stats_ref, *, TH, Wp, W, Cin, Cout):
    # xp_ref   : (1, H+2, Wp, Cin)  bf16 zero-padded image, resident across h
    # w_ref    : (9*Cin, Cout)      bf16, (kh, kw, cin)-flattened weights
    # o_ref    : (1, TH, W, Cout)   bf16 conv output for this row block
    # stats_ref: (1, 1, 2, Cout)    f32 [sum ; sum of squares] over this block
    h = pl.program_id(1)
    L = (TH + 2) * Wp
    M = TH * Wp

    # (TH+2)-row halo strip. Wp % 16 == 0, so collapsing (rows, Wp) -> rows*Wp
    # is tile-aligned for bf16 (no relayout copy).
    strip = xp_ref[0, pl.ds(h * TH, TH + 2), :, :]           # (TH+2, Wp, Cin)
    xs = strip.reshape(L, Cin)                               # bf16

    # Column (kw) shifts: only two rotations (kw = 1, 2).  The kw = 0 taps and
    # all kh offsets are tile-aligned static slices (free views).  Rotations
    # run on an f32 upcast (packed-bf16 sublane rotates are not universally
    # supported by Mosaic) and are cast straight back to bf16.
    xs32 = xs.astype(jnp.float32)
    shifted = (
        xs,                                                               # kw=0
        pltpu.roll(xs32, shift=L - 1, axis=0).astype(jnp.bfloat16),       # kw=1
        pltpu.roll(xs32, shift=L - 2, axis=0).astype(jnp.bfloat16),       # kw=2
    )
    # tap(kh, kw)[m] = strip_flat[m + kh*Wp + kw]; roll wrap-around only lands
    # in pad columns (guaranteed by Wp >= W+2), which are discarded below.
    taps = [shifted[kw][kh * Wp:kh * Wp + M, :]
            for kh in range(3) for kw in range(3)]
    patch = jnp.concatenate(taps, axis=-1)                   # (M, 9*Cin) bf16

    # Single deep MXU contraction (K = 9*Cin), f32 accumulation.
    acc = jnp.dot(patch, w_ref[...], preferred_element_type=jnp.float32)

    y = acc.reshape(TH, Wp, Cout)[:, :W, :]                  # drop pad columns
    # TODO(synk): emit y in a (rows, fold*Cout >= 128) lane-dense layout once
    # Mosaic's minor-dim-merging reshape is verified on the target jax version;
    # the store path here is Cout lanes wide (masked for Cout < 128), mitigated
    # by the bf16 output halving the stored bytes.
    o_ref[...] = y.reshape(1, TH, W, Cout).astype(jnp.bfloat16)

    # Fused BN statistics (single f32 pass) so y is never re-read from HBM.
    yf = y.reshape(TH * W, Cout)
    s = jnp.sum(yf, axis=0, keepdims=True)
    ss = jnp.sum(yf * yf, axis=0, keepdims=True)
    stats_ref[...] = jnp.concatenate([s, ss], axis=0).reshape(1, 1, 2, Cout)


def conv3x3_nhwc(x_nhwc, w_hwio):
    """x: (N,H,W,Cin) f32, w: (3,3,Cin,Cout) ->
       (y: (N,H,W,Cout) bf16 bias-free conv, stats: (N,H//TH,2,Cout) f32)."""
    N, H, W, Cin = x_nhwc.shape
    Cout = w_hwio.shape[-1]

    Wp = _round_up(W + 2, 16)            # padded width, bf16 sublane tile = 16
    # Row-block height from a per-block VMEM temp budget (bigger blocks
    # amortize the ~0.35 us per-step overhead), clamped to a divisor of H.
    per_row = Wp * (Cin * 16 + 9 * Cin * 2 + Cout * 10)
    cap = max(8, min(64, (12 << 20) // max(per_row, 1)))
    TH = _largest_divisor(H, cap)
    Hb = H // TH

    # 'same' zero padding fused with the bf16 downcast (half-size HBM copy and
    # half the VMEM residency vs padding in f32).
    # TODO(synk): zero the 1-px halo in-kernel to drop this HBM round trip, and
    # strip-DMA the image (memory_space=pl.ANY / Buffered(1)) for images too
    # large to keep VMEM-resident on v7x.
    xp = jnp.pad(x_nhwc.astype(jnp.bfloat16),
                 ((0, 0), (1, 1), (1, Wp - W - 1), (0, 0)))

    w9 = w_hwio.reshape(9 * Cin, Cout).astype(jnp.bfloat16)   # cast once, tiny

    kernel = functools.partial(_conv3x3_kernel,
                               TH=TH, Wp=Wp, W=W, Cin=Cin, Cout=Cout)

    L = (TH + 2) * Wp
    M = TH * Wp
    img_bytes = (H + 2) * Wp * Cin * 2
    out_bytes = TH * W * Cout * 2
    tmp_bytes = (L * Cin * (4 * 3 + 2 * 2)     # xs32 + 2 f32 rolls + 2 bf16 copies
                 + M * 9 * Cin * 2             # bf16 im2col patch
                 + M * Cout * 8)               # f32 acc + y
    vmem = _vmem_limit(2 * img_bytes + 2 * out_bytes + tmp_bytes
                       + 2 * 9 * Cin * Cout * 2)

    y, stats = pl.pallas_call(
        kernel,
        out_shape=(jax.ShapeDtypeStruct((N, H, W, Cout), jnp.bfloat16),
                   jax.ShapeDtypeStruct((N, Hb, 2, Cout), jnp.float32)),
        grid_spec=pltpu.PrefetchScalarGridSpec(
            num_scalar_prefetch=0,
            grid=(N, Hb),
            in_specs=[
                # Padded image resident across the row-block axis (constant in h).
                pl.BlockSpec((1, H + 2, Wp, Cin), lambda n, h: (n, 0, 0, 0)),
                pl.BlockSpec((9 * Cin, Cout), lambda n, h: (0, 0)),
            ],
            out_specs=[
                pl.BlockSpec((1, TH, W, Cout), lambda n, h: (n, h, 0, 0)),
                pl.BlockSpec((1, 1, 2, Cout), lambda n, h: (n, h, 0, 0)),
            ],
        ),
        compiler_params=pltpu.CompilerParams(
            dimension_semantics=("parallel", "parallel"),
            vmem_limit_bytes=vmem),
    )(xp, w9)
    return y, stats


# -----------------------------------------------------------------------------
# Kernel 2: BN apply (y*scale + shift) + Tanh, lane-dense tiled elementwise pass
# -----------------------------------------------------------------------------
def _bn_tanh_kernel(y_ref, scale_ref, shift_ref, o_ref):
    # TODO(synk): on v7x (3.2 TB/s HBM) re-profile whether tanh (single EUP
    # slot) rather than HBM becomes the binding unit for this pass.
    yv = y_ref[...].astype(jnp.float32)
    o_ref[...] = jnp.tanh(yv * scale_ref[...] + shift_ref[...])


def bn_tanh_apply(y_nhwc, mean, var, gamma, beta, eps=1e-5):
    N, H, W, C = y_nhwc.shape
    pixels = N * H * W

    scale = (gamma * jax.lax.rsqrt(var + eps)).astype(jnp.float32)
    shift = (beta - mean * scale).astype(jnp.float32)

    # Lane-dense view: fold f consecutive pixels into the lane dim so the last
    # dim lands at >= 256 lanes (free reshape of the contiguous HBM array).
    f = 1
    for d in range(1, pixels + 1):
        if pixels % d == 0:
            f = d
            if d * C >= 256:
                break
    Lf = f * C
    R = pixels // f

    # Row block: multiple of 8 (or the full extent when R < 8); cdiv grid with
    # a clipped tail so awkward R never degenerates into one whole-tensor block.
    if R < 8:
        TR = R
    else:
        TR = max(8, min(4096, (2 << 20) // (Lf * 4)))
        TR = min((TR // 8) * 8, (R // 8) * 8)
    grid_r = pl.cdiv(R, TR)

    y2 = y_nhwc.reshape(R, Lf)                      # free contiguous reshape
    scale2 = jnp.tile(scale, f).reshape(1, Lf)
    shift2 = jnp.tile(shift, f).reshape(1, Lf)

    vmem = _vmem_limit(TR * Lf * (2 * 2 + 4 * 2) + 4 * Lf * 4)

    out2 = pl.pallas_call(
        _bn_tanh_kernel,
        out_shape=jax.ShapeDtypeStruct((R, Lf), jnp.float32),
        grid_spec=pltpu.PrefetchScalarGridSpec(
            num_scalar_prefetch=0,
            grid=(grid_r,),
            in_specs=[
                pl.BlockSpec((TR, Lf), lambda i: (i, 0)),
                pl.BlockSpec((1, Lf), lambda i: (0, 0)),
                pl.BlockSpec((1, Lf), lambda i: (0, 0)),
            ],
            out_specs=pl.BlockSpec((TR, Lf), lambda i: (i, 0)),
        ),
        compiler_params=pltpu.CompilerParams(
            dimension_semantics=("parallel",),
            vmem_limit_bytes=vmem),
    )(y2, scale2, shift2)
    return out2.reshape(N, H, W, C)


# -----------------------------------------------------------------------------
# Module wrappers
# -----------------------------------------------------------------------------
def conv3_4_forward_nhwc(x_nhwc, w_oihw, b, gamma, beta, eps=1e-5):
    # The conv bias `b` is accepted for interface parity but intentionally
    # unused: with train-mode BatchNorm it is cancelled exactly by the mean
    # subtraction, so adding it in the kernel is dead work.
    # TODO(synk): eval-mode BN (running_mean/running_var) is not implemented;
    # it would reuse bn_tanh_apply and would need the bias added back.
    del b
    N, H, W, _ = x_nhwc.shape
    w_hwio = jnp.transpose(w_oihw, (2, 3, 1, 0))      # OIHW -> HWIO (tiny)
    y, stats = conv3x3_nhwc(x_nhwc, w_hwio)

    # Training-mode batch statistics (PyTorch BatchNorm2d forward in train()),
    # reduced in f32 from the conv-fused per-block sums (biased variance).
    count = N * H * W
    total = jnp.sum(stats[:, :, 0, :], axis=(0, 1))
    total_sq = jnp.sum(stats[:, :, 1, :], axis=(0, 1))
    mean = total / count
    var = jnp.maximum(total_sq / count - mean * mean, 0.0)

    return bn_tanh_apply(y, mean, var, gamma, beta, eps)


def conv3_4_forward(x_nchw, w_oihw, b, gamma, beta, eps=1e-5):
    # NCHW in/out to match the PyTorch module. Callers that can stay NHWC
    # end-to-end should use conv3_4_forward_nhwc and skip these transposes.
    x_nhwc = jnp.transpose(x_nchw, (0, 2, 3, 1))
    z = conv3_4_forward_nhwc(x_nhwc, w_oihw, b, gamma, beta, eps)
    return jnp.transpose(z, (0, 3, 1, 2))


# -----------------------------------------------------------------------------
# Pure-JAX reference (f32 HIGHEST precision) and test
# -----------------------------------------------------------------------------
def _reference(x_nchw, w_oihw, b, gamma, beta, eps=1e-5):
    y = jax.lax.conv_general_dilated(
        x_nchw, w_oihw, window_strides=(1, 1), padding="SAME",
        dimension_numbers=("NCHW", "OIHW", "NCHW"),
        precision=jax.lax.Precision.HIGHEST)
    y = y + b.reshape(1, -1, 1, 1)
    mean = jnp.mean(y, axis=(0, 2, 3), keepdims=True)
    var = jnp.mean((y - mean) ** 2, axis=(0, 2, 3), keepdims=True)
    yn = (y - mean) * jax.lax.rsqrt(var + eps)
    yn = yn * gamma.reshape(1, -1, 1, 1) + beta.reshape(1, -1, 1, 1)
    return jnp.tanh(yn)


if __name__ == "__main__":
    # Small shapes consistent with the module (defaults are 64->64; scaled down).
    N, Cin, Cout, H, W = 2, 4, 8, 16, 16

    key = jax.random.PRNGKey(0)
    kx, kw, kb = jax.random.split(key, 3)
    x = jax.random.normal(kx, (N, Cin, H, W), dtype=jnp.float32)

    # Deterministic parameter init (shapes from nn.Conv2d / nn.BatchNorm2d).
    fan_in = Cin * 3 * 3
    bound = 1.0 / jnp.sqrt(fan_in)
    w = jax.random.uniform(kw, (Cout, Cin, 3, 3), jnp.float32, -bound, bound)
    b = jax.random.uniform(kb, (Cout,), jnp.float32, -bound, bound)
    gamma = jnp.ones((Cout,), jnp.float32)   # BatchNorm2d default weight
    beta = jnp.zeros((Cout,), jnp.float32)   # BatchNorm2d default bias

    out = jax.block_until_ready(conv3_4_forward(x, w, b, gamma, beta))
    ref = _reference(x, w, b, gamma, beta)

    assert out.shape == (N, Cout, H, W)
    # Kernel uses a bf16 image, bf16 MXU operands (f32 accumulation) and a bf16
    # intermediate y; reference is exact f32, hence the relaxed tolerance on a
    # tanh-bounded output in [-1, 1].
    assert jnp.allclose(out, ref, atol=3e-2, rtol=3e-2), "mismatch vs reference"

    print("KERNEL_OK")
</pallas_src>

<mosaic_0001>
module attributes {stable_mosaic.version = 11 : i64} {
  func.func @_conv3x3_kernel(%arg0: i32, %arg1: i32, %arg2: memref<1x18x32x4xbf16, #tpu.memory_space<vmem>>, %arg3: memref<36x8xbf16, #tpu.memory_space<vmem>>, %arg4: memref<1x16x16x8xbf16, #tpu.memory_space<vmem>>, %arg5: memref<1x1x2x8xf32, #tpu.memory_space<vmem>>) attributes {dimension_semantics = [#tpu.dimension_semantics<parallel>, #tpu.dimension_semantics<parallel>], iteration_bounds = array<i64: 2, 1>, scalar_prefetch = 0 : i64, scratch_operands = 0 : i64, tpu.core_type = #tpu.core_type<tc>, window_params = [{transform_indices = @transform_0, window_bounds = array<i64: 1, 18, 32, 4>}, {pipeline_mode = #tpu.pipeline_mode<synchronous>, transform_indices = @transform_1, window_bounds = array<i64: 36, 8>}, {transform_indices = @transform_2, window_bounds = array<i64: 1, 16, 16, 8>}, {transform_indices = @transform_3, window_bounds = array<i64: 1, 1, 2, 8>}]} {
    %c16_i32 = arith.constant 16 : i32
    %0 = arith.muli %arg1, %c16_i32 : i32
    %c0 = arith.constant 0 : index
    %1 = arith.index_cast %0 : i32 to index
    %c0_0 = arith.constant 0 : index
    %c0_1 = arith.constant 0 : index
    %2 = vector.load %arg2[%c0, %1, %c0_0, %c0_1] : memref<1x18x32x4xbf16, #tpu.memory_space<vmem>>, vector<1x18x32x4xbf16>
    %3 = vector.shape_cast %2 : vector<1x18x32x4xbf16> to vector<18x32x4xbf16>
    %4 = vector.shape_cast %3 : vector<18x32x4xbf16> to vector<576x4xbf16>
    %5 = arith.extf %4 : vector<576x4xbf16> to vector<576x4xf32>
    %c575_i32 = arith.constant 575 : i32
    %6 = tpu.dynamic_rotate %5 by %c575_i32 dim 0 : vector<576x4xf32>, i32 -> vector<576x4xf32>
    %7 = arith.truncf %6 : vector<576x4xf32> to vector<576x4xbf16>
    %c574_i32 = arith.constant 574 : i32
    %8 = tpu.dynamic_rotate %5 by %c574_i32 dim 0 : vector<576x4xf32>, i32 -> vector<576x4xf32>
    %9 = arith.truncf %8 : vector<576x4xf32> to vector<576x4xbf16>
    %10 = vector.extract_strided_slice %4 {offsets = [0, 0], sizes = [512, 4], strides = [1, 1]} : vector<576x4xbf16> to vector<512x4xbf16>
    %11 = vector.extract_strided_slice %7 {offsets = [0, 0], sizes = [512, 4], strides = [1, 1]} : vector<576x4xbf16> to vector<512x4xbf16>
    %12 = vector.extract_strided_slice %9 {offsets = [0, 0], sizes = [512, 4], strides = [1, 1]} : vector<576x4xbf16> to vector<512x4xbf16>
    %13 = vector.extract_strided_slice %4 {offsets = [32, 0], sizes = [512, 4], strides = [1, 1]} : vector<576x4xbf16> to vector<512x4xbf16>
    %14 = vector.extract_strided_slice %7 {offsets = [32, 0], sizes = [512, 4], strides = [1, 1]} : vector<576x4xbf16> to vector<512x4xbf16>
    %15 = vector.extract_strided_slice %9 {offsets = [32, 0], sizes = [512, 4], strides = [1, 1]} : vector<576x4xbf16> to vector<512x4xbf16>
    %16 = vector.extract_strided_slice %4 {offsets = [64, 0], sizes = [512, 4], strides = [1, 1]} : vector<576x4xbf16> to vector<512x4xbf16>
    %17 = vector.extract_strided_slice %7 {offsets = [64, 0], sizes = [512, 4], strides = [1, 1]} : vector<576x4xbf16> to vector<512x4xbf16>
    %18 = vector.extract_strided_slice %9 {offsets = [64, 0], sizes = [512, 4], strides = [1, 1]} : vector<576x4xbf16> to vector<512x4xbf16>
    %19 = tpu.concatenate %10, %11, %12, %13, %14, %15, %16, %17, %18 in 1 : vector<512x4xbf16>, vector<512x4xbf16>, vector<512x4xbf16>, vector<512x4xbf16>, vector<512x4xbf16>, vector<512x4xbf16>, vector<512x4xbf16>, vector<512x4xbf16>, vector<512x4xbf16> -> vector<512x36xbf16>
    %c0_2 = arith.constant 0 : index
    %c0_3 = arith.constant 0 : index
    %20 = vector.load %arg3[%c0_2, %c0_3] : memref<36x8xbf16, #tpu.memory_space<vmem>>, vector<36x8xbf16>
    %cst = arith.constant dense<0.000000e+00> : vector<512x8xf32>
    %21 = tpu.matmul %19, %20, %cst {dimension_numbers = #tpu.dot_dimension_numbers<[1], [0], [0], [1], [0, 0, 1, 1], [], []>} : vector<512x36xbf16>, vector<36x8xbf16>, vector<512x8xf32> -> vector<512x8xf32>
    %22 = vector.shape_cast %21 : vector<512x8xf32> to vector<16x32x8xf32>
    %23 = vector.extract_strided_slice %22 {offsets = [0, 0, 0], sizes = [16, 16, 8], strides = [1, 1, 1]} : vector<16x32x8xf32> to vector<16x16x8xf32>
    %24 = vector.shape_cast %23 : vector<16x16x8xf32> to vector<1x16x16x8xf32>
    %25 = arith.truncf %24 : vector<1x16x16x8xf32> to vector<1x16x16x8xbf16>
    %c0_4 = arith.constant 0 : index
    %c0_5 = arith.constant 0 : index
    %c0_6 = arith.constant 0 : index
    %c0_7 = arith.constant 0 : index
    %26 = vector.load %arg4[%c0_4, %c0_5, %c0_6, %c0_7] : memref<1x16x16x8xbf16, #tpu.memory_space<vmem>>, vector<1x16x16x8xbf16>
    tpu.vector_store %arg4[%c0_4, %c0_5, %c0_6, %c0_7], %25 {strides = array<i32>} : memref<1x16x16x8xbf16, #tpu.memory_space<vmem>>, vector<1x16x16x8xbf16>,
    %27 = vector.shape_cast %23 : vector<16x16x8xf32> to vector<256x8xf32>
    %cst_8 = arith.constant dense<0.000000e+00> : vector<8xf32>
    %28 = vector.multi_reduction <add>, %27, %cst_8 [0] : vector<256x8xf32> to vector<8xf32>
    %29 = vector.shape_cast %28 : vector<8xf32> to vector<1x8xf32>
    %30 = arith.mulf %27, %27 : vector<256x8xf32>
    %cst_9 = arith.constant dense<0.000000e+00> : vector<8xf32>
    %31 = vector.multi_reduction <add>, %30, %cst_9 [0] : vector<256x8xf32> to vector<8xf32>
    %32 = vector.shape_cast %31 : vector<8xf32> to vector<1x8xf32>
    %33 = tpu.concatenate %29, %32 in 0 : vector<1x8xf32>, vector<1x8xf32> -> vector<2x8xf32>
    %34 = vector.shape_cast %33 : vector<2x8xf32> to vector<1x1x2x8xf32>
    %c0_10 = arith.constant 0 : index
    %c0_11 = arith.constant 0 : index
    %c0_12 = arith.constant 0 : index
    %c0_13 = arith.constant 0 : index
    %35 = vector.load %arg5[%c0_10, %c0_11, %c0_12, %c0_13] : memref<1x1x2x8xf32, #tpu.memory_space<vmem>>, vector<1x1x2x8xf32>
    tpu.vector_store %arg5[%c0_10, %c0_11, %c0_12, %c0_13], %34 {strides = array<i32>} : memref<1x1x2x8xf32, #tpu.memory_space<vmem>>, vector<1x1x2x8xf32>,
    return
  }
  func.func @transform_0(%arg0: i32, %arg1: i32) -> (i32, i32, i32, i32) {
    %c0_i32 = arith.constant 0 : i32
    %c0_i32_0 = arith.constant 0 : i32
    %c0_i32_1 = arith.constant 0 : i32
    %c0_i32_2 = arith.constant 0 : i32
    return %arg0, %c0_i32, %c0_i32_0, %c0_i32_1 : i32, i32, i32, i32
  }
  func.func @transform_1(%arg0: i32, %arg1: i32) -> (i32, i32) {
    %c0_i32 = arith.constant 0 : i32
    %c0_i32_0 = arith.constant 0 : i32
    %c0_i32_1 = arith.constant 0 : i32
    return %c0_i32, %c0_i32_0 : i32, i32
  }
  func.func @transform_2(%arg0: i32, %arg1: i32) -> (i32, i32, i32, i32) {
    %c0_i32 = arith.constant 0 : i32
    %c0_i32_0 = arith.constant 0 : i32
    %c0_i32_1 = arith.constant 0 : i32
    return %arg0, %arg1, %c0_i32, %c0_i32_0 : i32, i32, i32, i32
  }
  func.func @transform_3(%arg0: i32, %arg1: i32) -> (i32, i32, i32, i32) {
    %c0_i32 = arith.constant 0 : i32
    %c0_i32_0 = arith.constant 0 : i32
    %c0_i32_1 = arith.constant 0 : i32
    return %arg0, %arg1, %c0_i32, %c0_i32_0 : i32, i32, i32, i32
  }
}

</mosaic_0001>

<llo_original>
// kernel: tpu_custom_call.1
$region0: #{tpu_custom_call.1}
  #allocation0 [shape = 'u32[]', space=smem, size = 0x4, offset = 0x4, fixed_abs, tag = 'smem constant byte address 0x4 - core index']
  #allocation1 [shape = 'u32[144,128]{1,0:T(1,128)}', space=vmem, size = 0x12000, scoped, tag = 'internal scratch']
  %s0 = inlined_call_operand.vmem [shape: bf16[2,18,32,4], index: 0, kind: input, shape index: {}]
  %s1 = inlined_call_operand.vmem [shape: bf16[36,8], index: 1, kind: input, shape index: {}]
  %s2 = inlined_call_operand.vmem [shape: bf16[2,16,16,8], index: 2, kind: output, shape index: {0}]
  %s3 = inlined_call_operand.hbm [shape: f32[2,1,2,8], index: 3, kind: output, shape index: {1}]
  %4 = xla_tuple %s2, %s3
  %s5 = sld [smem:[#allocation0]]
  $region49: #{tpu_custom_call.1} parent=0
    _
  %s7 = ssub.s32 1, %s5
  %s8 = scalar_select 0, %s7, %s5
  $region1: #{tpu_custom_call.1} parent=0
    #allocation2 [shape = 'u8[2048]{0}', space=vmem, size = 0x800, scoped, tag = 'output window, operand 1']
    #allocation3 [shape = 's32[2]{0}', space=sflag, size = 0x8, scoped, tag = 'scoped memory for tpu_custom_call.1']
    %9 = vsyncpa [#allocation3], 0
    %s10 = scalar_lea.sflag [#allocation3], 1
    %11 = vsyncpa %s10, 0
    loop: start=0, step=1, limit=4
    $region2: #{tpu_custom_call.1} parent=1 // loop_pre_header
      _
    $region3: #{tpu_custom_call.1} parent=1 // loop_header
      %s13 = sphi 0, %s17
      %p14 = scmp.ge.s32.totalorder %s13, 4
      %s20 = sphi 0, %s32
      %s21 = sphi 0, %s28
      %s22 = sphi 0, %s20
      %s23 = sphi 0, %s21
      %s24 = sphi 0, %s22
      %s25 = sphi 0, %s23
      %s35 = sphi 0, %s37
      %s38 = sphi 0, %s35
      %s39 = sphi 0, %s38
      %s55 = sphi 0, %s39
      %s59 = sphi 0, %s59
      %s61 = sphi 0, %s59
      %s62 = sphi 0, %s61
      %s76 = sphi 0, %s62
      %s84 = sphi 0, %s86
      %s87 = sphi 0, %s84
      %s88 = sphi 0, %s87
      %s104 = sphi 0, %s88
      %s112 = sphi 0, %s114
      %s115 = sphi 0, %s112
      %s116 = sphi 0, %s115
      %s132 = sphi 0, %s116
    $region4: #{tpu_custom_call.1} parent=1 // loop_header_branch
      %16 = sbr.rel (%p14) target = $region8
    $region5: #{tpu_custom_call.1} parent=1 // loop_body
      %s18 = ssub.s32 %s13, 1
      %s19 = ssub.s32 %s13, 2
      %s26 = sadd.s32 1, %s21
      %p27 = scmp.ge.s32.totalorder %s26, 1
      %s28 = scalar_select %p27, 0, %s26
      %s29 = sadd.s32 1, %s20
      %s30 = scalar_select %p27, %s29, %s20
      %p31 = scmp.ge.s32.totalorder %s30, 2
      %s32 = scalar_select %p31, 0, %s30
      %s33 = ssub.s32 %s20, %s32
      %p34 = scmp.eq.s32.totalorder %s33, 0
      %s36 = sadd.s32 %s35, 1
      %s37 = scalar_select %p34, %s35, %s36
      %p40 = pneg %p34
      %p41 = scmp.eq.s32.totalorder %s13, 1
      %p42 = por %p40, %p41
      %p43 = scmp.ne.s32.totalorder %s35, %s38
      %p44 = scmp.eq.s32.totalorder %s13, 0
      %p45 = por %p43, %p44
      %p46 = scmp.ne.s32.totalorder %s35, %s38
      %p47 = scmp.eq.s32.totalorder %s18, 1
      %p48 = por %p46, %p47
      %p49 = scmp.ne.s32.totalorder %s38, %s39
      %p50 = scmp.eq.s32.totalorder %s18, 0
      %p51 = por %p49, %p50
      %p52 = scmp.ne.s32.totalorder %s38, %s39
      %p53 = scmp.eq.s32.totalorder %s19, 1
      %p54 = por %p52, %p53
      %p56 = scmp.ne.s32.totalorder %s39, %s55
      %p57 = scmp.eq.s32.totalorder %s19, 0
      %p58 = por %p56, %p57
      %s60 = sadd.s32 %s59, 1
      %p63 = scmp.eq.s32.totalorder %s13, 1
      %p64 = scmp.ne.s32.totalorder %s59, %s61
      %p65 = scmp.eq.s32.totalorder %s13, 0
      %p66 = por %p64, %p65
      %p67 = scmp.ne.s32.totalorder %s59, %s61
      %p68 = scmp.eq.s32.totalorder %s18, 1
      %p69 = por %p67, %p68
      %p70 = scmp.ne.s32.totalorder %s61, %s62
      %p71 = scmp.eq.s32.totalorder %s18, 0
      %p72 = por %p70, %p71
      %p73 = scmp.ne.s32.totalorder %s61, %s62
      %p74 = scmp.eq.s32.totalorder %s19, 1
      %p75 = por %p73, %p74
      %p77 = scmp.ne.s32.totalorder %s62, %s76
      %p78 = scmp.eq.s32.totalorder %s19, 0
      %p79 = por %p77, %p78
      %s80 = ssub.s32 %s20, %s32
      %s81 = ssub.s32 %s21, %s28
      %s82 = sor.u32 %s80, %s81
      %p83 = scmp.eq.s32.totalorder %s82, 0
      %s85 = sadd.s32 %s84, 1
      %s86 = scalar_select %p83, %s84, %s85
      %p89 = pneg %p83
      %p90 = scmp.eq.s32.totalorder %s13, 1
      %p91 = por %p89, %p90
      %p92 = scmp.ne.s32.totalorder %s84, %s87
      %p93 = scmp.eq.s32.totalorder %s13, 0
      %p94 = por %p92, %p93
      %p95 = scmp.ne.s32.totalorder %s84, %s87
      %p96 = scmp.eq.s32.totalorder %s18, 1
      %p97 = por %p95, %p96
      %p98 = scmp.ne.s32.totalorder %s87, %s88
      %p99 = scmp.eq.s32.totalorder %s18, 0
      %p100 = por %p98, %p99
      %p101 = scmp.ne.s32.totalorder %s87, %s88
      %p102 = scmp.eq.s32.totalorder %s19, 1
      %p103 = por %p101, %p102
      %p105 = scmp.ne.s32.totalorder %s88, %s104
      %p106 = scmp.eq.s32.totalorder %s19, 0
      %p107 = por %p105, %p106
      %s108 = ssub.s32 %s20, %s32
      %s109 = ssub.s32 %s21, %s28
      %s110 = sor.u32 %s108, %s109
      %p111 = scmp.eq.s32.totalorder %s110, 0
      %s113 = sadd.s32 %s112, 1
      %s114 = scalar_select %p111, %s112, %s113
      %p117 = pneg %p111
      %p118 = scmp.eq.s32.totalorder %s13, 1
      %p119 = por %p117, %p118
      %p120 = scmp.ne.s32.totalorder %s112, %s115
      %p121 = scmp.eq.s32.totalorder %s13, 0
      %p122 = por %p120, %p121
      %p123 = scmp.ne.s32.totalorder %s112, %s115
      %p124 = scmp.eq.s32.totalorder %s18, 1
      %p125 = por %p123, %p124
      %p126 = scmp.ne.s32.totalorder %s115, %s116
      %p127 = scmp.eq.s32.totalorder %s18, 0
      %p128 = por %p126, %p127
      %p129 = scmp.ne.s32.totalorder %s115, %s116
      %p130 = scmp.eq.s32.totalorder %s19, 1
      %p131 = por %p129, %p130
      %p133 = scmp.ne.s32.totalorder %s116, %s132
      %p134 = scmp.eq.s32.totalorder %s19, 0
      %p135 = por %p133, %p134
      %p136 = scmp.le.s32.totalorder 1, %s13
      %p137 = scmp.lt.s32.totalorder %s13, 3
      %p138 = pnand %p136, %p137
      %p139 = pneg %p138
      // Predicated region
      $region9: #{tpu_custom_call.1} parent=5 // pred_check
        _
      $region10: #{tpu_custom_call.1} parent=5 // pred_check_branch
        %141 = sbr.rel (%p138) target = $region12
      $region11: #{tpu_custom_call.1} parent=5 // pred_region
        %s142 = ssub.s32 %s13, 1
        // Predicated region
        $region13: #{tpu_custom_call.1} parent=11 // pred_check
          %p143 = pneg %p72
        $region14: #{tpu_custom_call.1} parent=11 // pred_check_branch
          %145 = sbr.rel (%p143) target = $region16
        $region15: #{tpu_custom_call.1} parent=11 // pred_region
          _
        $region16: #{tpu_custom_call.1} parent=11 // pred_fallthru
          _
      $region12: #{tpu_custom_call.1} parent=5 // pred_fallthru
        _
      %p146 = scmp.lt.s32.totalorder %s13, 2
      // Predicated region
      $region17: #{tpu_custom_call.1} parent=5 // pred_check
        %p147 = pneg %p146
      $region18: #{tpu_custom_call.1} parent=5 // pred_check_branch
        %149 = sbr.rel (%p147) target = $region20
      $region19: #{tpu_custom_call.1} parent=5 // pred_region
        // Predicated region
        $region21: #{tpu_custom_call.1} parent=19 // pred_check
          %p150 = pneg %p45
        $region22: #{tpu_custom_call.1} parent=19 // pred_check_branch
          %152 = sbr.rel (%p150) target = $region24
        $region23: #{tpu_custom_call.1} parent=19 // pred_region
          %p153 = scmp.lt.s32.totalorder %s20, 1
          %s154 = scalar_select %p153, %s20, 1
          %s155 = smul.addr %s154, 72
          %s156 = smul.addr %s155, 4
          %s157 = scalar_lea.vmem %s0, %s156
        $region24: #{tpu_custom_call.1} parent=19 // pred_fallthru
          _
      $region20: #{tpu_custom_call.1} parent=5 // pred_fallthru
        _
      %p158 = scmp.le.s32.totalorder 1, %s13
      %p159 = scmp.lt.s32.totalorder %s13, 3
      %p160 = pnand %p158, %p159
      %p161 = pneg %p160
      // Predicated region
      $region25: #{tpu_custom_call.1} parent=5 // pred_check
        _
      $region26: #{tpu_custom_call.1} parent=5 // pred_check_branch
        %163 = sbr.rel (%p160) target = $region28
      $region27: #{tpu_custom_call.1} parent=5 // pred_region
        %s164 = ssub.s32 %s13, 1
        %p165 = scmp.lt.s32.totalorder %s22, 1
        %s166 = scalar_select %p165, %s22, 1
        %s167 = smul.addr %s166, 72
        %s168 = smul.addr %s167, 4
        %s169 = scalar_lea.vmem %s0, %s168
        %p170 = pneg %p51
        %p171 = pneg %p48
        %p172 = pneg %p72
        %p173 = pneg %p69
        %p174 = pneg %p100
        %p175 = pneg %p97
        %s176 = smul.u32 16, %s23
        %p177 = scmp.lt.s32.totalorder %s22, 1
        %s178 = scalar_select %p177, %s22, 1
        %p179 = scmp.lt.s32.totalorder %s176, 15
        %s180 = scalar_select %p179, %s176, 15
        %s181 = smul.addr %s180, 2
        %s182 = smul.addr %s178, 32
        %s183 = sadd.s32 %s181, %s182
        %s184 = smul.addr %s183, 4
        %s185 = scalar_lea.vmem %s2, %s184
        %p186 = pneg %p128
        %p187 = pneg %p125
        %s188 = sand.u32 %s115, 1
        %s189 = scalar_lea.sflag [#allocation3], %s188
        %s190 = sand.u32 %s115, 1
        %s191 = smul.addr %s190, 2
        %s192 = scalar_lea.vmem [#allocation2], %s191
        %p193 = scmp.lt.s32.totalorder %s22, 1
        %s194 = scalar_select %p193, %s22, 1
        %s195 = smul.addr %s194, 72
        %s196 = smul.addr %s195, 4
        %s197 = scalar_lea.vmem %s0, %s196
        %s198 = smul.u32 16, %s23
        %p199 = scmp.lt.s32.totalorder %s22, 1
        %s200 = scalar_select %p199, %s22, 1
        %p201 = scmp.lt.s32.totalorder %s198, 15
        %s202 = scalar_select %p201, %s198, 15
        %s203 = smul.addr %s202, 2
        %s204 = smul.addr %s200, 32
        %s205 = sadd.s32 %s203, %s204
        %s206 = smul.addr %s205, 4
        %s207 = scalar_lea.vmem %s2, %s206
        %s208 = smul.u32 16, %s23
        %s210 = smul.u32 %s23, 16
        %s211 = smul.u32 %s210, 4
        %s212 = smul.addr %s211, 4
        %s213 = scalar_lea.vmem %s197, %s212
        %v214 = vld [vmem:[%s213] sm:$0xf]
        %v215 = vld [vmem:[%s213 + $0x4] sm:$0xf]
        %v216 = vld [vmem:[%s213 + $0x8] sm:$0xf]
        %v217 = vld [vmem:[%s213 + $0xc] sm:$0xf]
        %v218 = vld [vmem:[%s213 + $0x10] sm:$0xf]
        %v219 = vld [vmem:[%s213 + $0x14] sm:$0xf]
        %v220 = vld [vmem:[%s213 + $0x18] sm:$0xf]
        %v221 = vld [vmem:[%s213 + $0x1c] sm:$0xf]
        %v222 = vld [vmem:[%s213 + $0x20] sm:$0xf]
        %v223 = vld [vmem:[%s213 + $0x24] sm:$0xf]
        %v224 = vld [vmem:[%s213 + $0x28] sm:$0xf]
        %v225 = vld [vmem:[%s213 + $0x2c] sm:$0xf]
        %v226 = vld [vmem:[%s213 + $0x30] sm:$0xf]
        %v227 = vld [vmem:[%s213 + $0x34] sm:$0xf]
        %v228 = vld [vmem:[%s213 + $0x38] sm:$0xf]
        %v229 = vld [vmem:[%s213 + $0x3c] sm:$0xf]
        %v230 = vld [vmem:[%s213 + $0x40] sm:$0xf]
        %v231 = vld [vmem:[%s213 + $0x44] sm:$0xf]
        %v232 = vld [vmem:[%s213 + $0x48] sm:$0xf]
        %v233 = vld [vmem:[%s213 + $0x4c] sm:$0xf]
        %v234 = vld [vmem:[%s213 + $0x50] sm:$0xf]
        %v235 = vld [vmem:[%s213 + $0x54] sm:$0xf]
        %v236 = vld [vmem:[%s213 + $0x58] sm:$0xf]
        %v237 = vld [vmem:[%s213 + $0x5c] sm:$0xf]
        %v238 = vld [vmem:[%s213 + $0x60] sm:$0xf]
        %v239 = vld [vmem:[%s213 + $0x64] sm:$0xf]
        %v240 = vld [vmem:[%s213 + $0x68] sm:$0xf]
        %v241 = vld [vmem:[%s213 + $0x6c] sm:$0xf]
        %v242 = vld [vmem:[%s213 + $0x70] sm:$0xf]
        %v243 = vld [vmem:[%s213 + $0x74] sm:$0xf]
        %v244 = vld [vmem:[%s213 + $0x78] sm:$0xf]
        %v245 = vld [vmem:[%s213 + $0x7c] sm:$0xf]
        %v246 = vld [vmem:[%s213 + $0x80] sm:$0xf]
        %v247 = vld [vmem:[%s213 + $0x84] sm:$0xf]
        %v248 = vld [vmem:[%s213 + $0x88] sm:$0xf]
        %v249 = vld [vmem:[%s213 + $0x8c] sm:$0xf]
        %v250 = vld [vmem:[%s213 + $0x90] sm:$0xf]
        %v251 = vld [vmem:[%s213 + $0x94] sm:$0xf]
        %v252 = vld [vmem:[%s213 + $0x98] sm:$0xf]
        %v253 = vld [vmem:[%s213 + $0x9c] sm:$0xf]
        %v254 = vld [vmem:[%s213 + $0xa0] sm:$0xf]
        %v255 = vld [vmem:[%s213 + $0xa4] sm:$0xf]
        %v256 = vld [vmem:[%s213 + $0xa8] sm:$0xf]
        %v257 = vld [vmem:[%s213 + $0xac] sm:$0xf]
        %v258 = vld [vmem:[%s213 + $0xb0] sm:$0xf]
        %v259 = vld [vmem:[%s213 + $0xb4] sm:$0xf]
        %v260 = vld [vmem:[%s213 + $0xb8] sm:$0xf]
        %v261 = vld [vmem:[%s213 + $0xbc] sm:$0xf]
        %v262 = vld [vmem:[%s213 + $0xc0] sm:$0xf]
        %v263 = vld [vmem:[%s213 + $0xc4] sm:$0xf]
        %v264 = vld [vmem:[%s213 + $0xc8] sm:$0xf]
        %v265 = vld [vmem:[%s213 + $0xcc] sm:$0xf]
        %v266 = vld [vmem:[%s213 + $0xd0] sm:$0xf]
        %v267 = vld [vmem:[%s213 + $0xd4] sm:$0xf]
        %v268 = vld [vmem:[%s213 + $0xd8] sm:$0xf]
        %v269 = vld [vmem:[%s213 + $0xdc] sm:$0xf]
        %v270 = vld [vmem:[%s213 + $0xe0] sm:$0xf]
        %v271 = vld [vmem:[%s213 + $0xe4] sm:$0xf]
        %v272 = vld [vmem:[%s213 + $0xe8] sm:$0xf]
        %v273 = vld [vmem:[%s213 + $0xec] sm:$0xf]
        %v274 = vld [vmem:[%s213 + $0xf0] sm:$0xf]
        %v275 = vld [vmem:[%s213 + $0xf4] sm:$0xf]
        %v276 = vld [vmem:[%s213 + $0xf8] sm:$0xf]
        %v277 = vld [vmem:[%s213 + $0xfc] sm:$0xf]
        %v278 = vld [vmem:[%s213 + $0x100] sm:$0xf]
        %v279 = vld [vmem:[%s213 + $0x104] sm:$0xf]
        %v280 = vld [vmem:[%s213 + $0x108] sm:$0xf]
        %v281 = vld [vmem:[%s213 + $0x10c] sm:$0xf]
        %v282 = vld [vmem:[%s213 + $0x110] sm:$0xf]
        %v283 = vld [vmem:[%s213 + $0x114] sm:$0xf]
        %v284 = vld [vmem:[%s213 + $0x118] sm:$0xf]
        %v285 = vld [vmem:[%s213 + $0x11c] sm:$0xf]
        %v286 = vunpack.c.l.bf16 %v214
        %v287 = vunpack.c.l.bf16 %v215
        %v288 = vunpack.c.l.bf16 %v216
        %v289 = vunpack.c.l.bf16 %v217
        %v290 = vunpack.c.l.bf16 %v218
        %v291 = vunpack.c.l.bf16 %v219
        %v292 = vunpack.c.l.bf16 %v220
        %v293 = vunpack.c.l.bf16 %v221
        %v294 = vunpack.c.l.bf16 %v222
        %v295 = vunpack.c.l.bf16 %v223
        %v296 = vunpack.c.l.bf16 %v224
        %v297 = vunpack.c.l.bf16 %v225
        %v298 = vunpack.c.l.bf16 %v226
        %v299 = vunpack.c.l.bf16 %v227
        %v300 = vunpack.c.l.bf16 %v228
        %v301 = vunpack.c.l.bf16 %v229
        %v302 = vunpack.c.l.bf16 %v230
        %v303 = vunpack.c.l.bf16 %v231
        %v304 = vunpack.c.l.bf16 %v232
        %v305 = vunpack.c.l.bf16 %v233
        %v306 = vunpack.c.l.bf16 %v234
        %v307 = vunpack.c.l.bf16 %v235
        %v308 = vunpack.c.l.bf16 %v236
        %v309 = vunpack.c.l.bf16 %v237
        %v310 = vunpack.c.l.bf16 %v238
        %v311 = vunpack.c.l.bf16 %v239
        %v312 = vunpack.c.l.bf16 %v240
        %v313 = vunpack.c.l.bf16 %v241
        %v314 = vunpack.c.l.bf16 %v242
        %v315 = vunpack.c.l.bf16 %v243
        %v316 = vunpack.c.l.bf16 %v244
        %v317 = vunpack.c.l.bf16 %v245
        %v318 = vunpack.c.l.bf16 %v246
        %v319 = vunpack.c.l.bf16 %v247
        %v320 = vunpack.c.l.bf16 %v248
        %v321 = vunpack.c.l.bf16 %v249
        %v322 = vunpack.c.l.bf16 %v250
        %v323 = vunpack.c.l.bf16 %v251
        %v324 = vunpack.c.l.bf16 %v252
        %v325 = vunpack.c.l.bf16 %v253
        %v326 = vunpack.c.l.bf16 %v254
        %v327 = vunpack.c.l.bf16 %v255
        %v328 = vunpack.c.l.bf16 %v256
        %v329 = vunpack.c.l.bf16 %v257
        %v330 = vunpack.c.l.bf16 %v258
        %v331 = vunpack.c.l.bf16 %v259
        %v332 = vunpack.c.l.bf16 %v260
        %v333 = vunpack.c.l.bf16 %v261
        %v334 = vunpack.c.l.bf16 %v262
        %v335 = vunpack.c.l.bf16 %v263
        %v336 = vunpack.c.l.bf16 %v264
        %v337 = vunpack.c.l.bf16 %v265
        %v338 = vunpack.c.l.bf16 %v266
        %v339 = vunpack.c.l.bf16 %v267
        %v340 = vunpack.c.l.bf16 %v268
        %v341 = vunpack.c.l.bf16 %v269
        %v342 = vunpack.c.l.bf16 %v270
        %v343 = vunpack.c.l.bf16 %v271
        %v344 = vunpack.c.l.bf16 %v272
        %v345 = vunpack.c.l.bf16 %v273
        %v346 = vunpack.c.l.bf16 %v274
        %v347 = vunpack.c.l.bf16 %v275
        %v348 = vunpack.c.l.bf16 %v276
        %v349 = vunpack.c.l.bf16 %v277
        %v350 = vunpack.c.l.bf16 %v278
        %v351 = vunpack.c.l.bf16 %v279
        %v352 = vunpack.c.l.bf16 %v280
        %v353 = vunpack.c.l.bf16 %v281
        %v354 = vunpack.c.l.bf16 %v282
        %v355 = vunpack.c.l.bf16 %v283
        %v356 = vunpack.c.l.bf16 %v284
        %v357 = vunpack.c.l.bf16 %v285
        %v358 = vrot.slane %v286, 1
        %v359 = vrot.slane %v287, 1
        %v360 = vrot.slane %v288, 1
        %v361 = vrot.slane %v289, 1
        %v362 = vrot.slane %v290, 1
        %v363 = vrot.slane %v291, 1
        %v364 = vrot.slane %v292, 1
        %v365 = vrot.slane %v293, 1
        %v366 = vrot.slane %v294, 1
        %v367 = vrot.slane %v295, 1
        %v368 = vrot.slane %v296, 1
        %v369 = vrot.slane %v297, 1
        %v370 = vrot.slane %v298, 1
        %v371 = vrot.slane %v299, 1
        %v372 = vrot.slane %v300, 1
        %v373 = vrot.slane %v301, 1
        %v374 = vrot.slane %v302, 1
        %v375 = vrot.slane %v303, 1
        %v376 = vrot.slane %v304, 1
        %v377 = vrot.slane %v305, 1
        %v378 = vrot.slane %v306, 1
        %v379 = vrot.slane %v307, 1
        %v380 = vrot.slane %v308, 1
        %v381 = vrot.slane %v309, 1
        %v382 = vrot.slane %v310, 1
        %v383 = vrot.slane %v311, 1
        %v384 = vrot.slane %v312, 1
        %v385 = vrot.slane %v313, 1
        %v386 = vrot.slane %v314, 1
        %v387 = vrot.slane %v315, 1
        %v388 = vrot.slane %v316, 1
        %v389 = vrot.slane %v317, 1
        %v390 = vrot.slane %v318, 1
        %v391 = vrot.slane %v319, 1
        %v392 = vrot.slane %v320, 1
        %v393 = vrot.slane %v321, 1
        %v394 = vrot.slane %v322, 1
        %v395 = vrot.slane %v323, 1
        %v396 = vrot.slane %v324, 1
        %v397 = vrot.slane %v325, 1
        %v398 = vrot.slane %v326, 1
        %v399 = vrot.slane %v327, 1
        %v400 = vrot.slane %v328, 1
        %v401 = vrot.slane %v329, 1
        %v402 = vrot.slane %v330, 1
        %v403 = vrot.slane %v331, 1
        %v404 = vrot.slane %v332, 1
        %v405 = vrot.slane %v333, 1
        %v406 = vrot.slane %v334, 1
        %v407 = vrot.slane %v335, 1
        %v408 = vrot.slane %v336, 1
        %v409 = vrot.slane %v337, 1
        %v410 = vrot.slane %v338, 1
        %v411 = vrot.slane %v339, 1
        %v412 = vrot.slane %v340, 1
        %v413 = vrot.slane %v341, 1
        %v414 = vrot.slane %v342, 1
        %v415 = vrot.slane %v343, 1
        %v416 = vrot.slane %v344, 1
        %v417 = vrot.slane %v345, 1
        %v418 = vrot.slane %v346, 1
        %v419 = vrot.slane %v347, 1
        %v420 = vrot.slane %v348, 1
        %v421 = vrot.slane %v349, 1
        %v422 = vrot.slane %v350, 1
        %v423 = vrot.slane %v351, 1
        %v424 = vrot.slane %v352, 1
        %v425 = vrot.slane %v353, 1
        %v426 = vrot.slane %v354, 1
        %v427 = vrot.slane %v355, 1
        %v428 = vrot.slane %v356, 1
        %v429 = vrot.slane %v357, 1
        %v430 = vlaneseq
        %v431 = vshrl.u32 %v430, 7
        %vm432 = vcmp.lt.s32.totalorder %v431, 7
        %v433 = vsel %vm432, %v428, %v429
        %v434 = vsel %vm432, %v427, %v428
        %v435 = vsel %vm432, %v426, %v427
        %v436 = vsel %vm432, %v425, %v426
        %v437 = vsel %vm432, %v424, %v425
        %v438 = vsel %vm432, %v423, %v424
        %v439 = vsel %vm432, %v422, %v423
        %v440 = vsel %vm432, %v421, %v422
        %v441 = vsel %vm432, %v420, %v421
        %v442 = vsel %vm432, %v419, %v420
        %v443 = vsel %vm432, %v418, %v419
        %v444 = vsel %vm432, %v417, %v418
        %v445 = vsel %vm432, %v416, %v417
        %v446 = vsel %vm432, %v415, %v416
        %v447 = vsel %vm432, %v414, %v415
        %v448 = vsel %vm432, %v413, %v414
        %v449 = vsel %vm432, %v412, %v413
        %v450 = vsel %vm432, %v411, %v412
        %v451 = vsel %vm432, %v410, %v411
        %v452 = vsel %vm432, %v409, %v410
        %v453 = vsel %vm432, %v408, %v409
        %v454 = vsel %vm432, %v407, %v408
        %v455 = vsel %vm432, %v406, %v407
        %v456 = vsel %vm432, %v405, %v406
        %v457 = vsel %vm432, %v404, %v405
        %v458 = vsel %vm432, %v403, %v404
        %v459 = vsel %vm432, %v402, %v403
        %v460 = vsel %vm432, %v401, %v402
        %v461 = vsel %vm432, %v400, %v401
        %v462 = vsel %vm432, %v399, %v400
        %v463 = vsel %vm432, %v398, %v399
        %v464 = vsel %vm432, %v397, %v398
        %v465 = vsel %vm432, %v396, %v397
        %v466 = vsel %vm432, %v395, %v396
        %v467 = vsel %vm432, %v394, %v395
        %v468 = vsel %vm432, %v393, %v394
        %v469 = vsel %vm432, %v392, %v393
        %v470 = vsel %vm432, %v391, %v392
        %v471 = vsel %vm432, %v390, %v391
        %v472 = vsel %vm432, %v389, %v390
        %v473 = vsel %vm432, %v388, %v389
        %v474 = vsel %vm432, %v387, %v388
        %v475 = vsel %vm432, %v386, %v387
        %v476 = vsel %vm432, %v385, %v386
        %v477 = vsel %vm432, %v384, %v385
        %v478 = vsel %vm432, %v383, %v384
        %v479 = vsel %vm432, %v382, %v383
        %v480 = vsel %vm432, %v381, %v382
        %v481 = vsel %vm432, %v380, %v381
        %v482 = vsel %vm432, %v379, %v380
        %v483 = vsel %vm432, %v378, %v379
        %v484 = vsel %vm432, %v377, %v378
        %v485 = vsel %vm432, %v376, %v377
        %v486 = vsel %vm432, %v375, %v376
        %v487 = vsel %vm432, %v374, %v375
        %v488 = vsel %vm432, %v373, %v374
        %v489 = vsel %vm432, %v372, %v373
        %v490 = vsel %vm432, %v371, %v372
        %v491 = vsel %vm432, %v370, %v371
        %v492 = vsel %vm432, %v369, %v370
        %v493 = vsel %vm432, %v368, %v369
        %v494 = vsel %vm432, %v367, %v368
        %v495 = vsel %vm432, %v366, %v367
        %v496 = vsel %vm432, %v365, %v366
        %v497 = vsel %vm432, %v364, %v365
        %v498 = vsel %vm432, %v363, %v364
        %v499 = vsel %vm432, %v362, %v363
        %v500 = vsel %vm432, %v361, %v362
        %v501 = vsel %vm432, %v360, %v361
        %v502 = vsel %vm432, %v359, %v360
        %v503 = vsel %vm432, %v358, %v359
        %v504 = vsel %vm432, %v429, %v358
        %v505 = vpack.c.bf16 %v502, %v503
        %v506 = vpack.c.bf16 %v500, %v501
        %v507 = vpack.c.bf16 %v498, %v499
        %v508 = vpack.c.bf16 %v496, %v497
        %v509 = vpack.c.bf16 %v494, %v495
        %v510 = vpack.c.bf16 %v492, %v493
        %v511 = vpack.c.bf16 %v490, %v491
        %v512 = vpack.c.bf16 %v488, %v489
        %v513 = vpack.c.bf16 %v486, %v487
        %v514 = vpack.c.bf16 %v484, %v485
        %v515 = vpack.c.bf16 %v482, %v483
        %v516 = vpack.c.bf16 %v480, %v481
        %v517 = vpack.c.bf16 %v478, %v479
        %v518 = vpack.c.bf16 %v476, %v477
        %v519 = vpack.c.bf16 %v474, %v475
        %v520 = vpack.c.bf16 %v472, %v473
        %v521 = vpack.c.bf16 %v470, %v471
        %v522 = vpack.c.bf16 %v468, %v469
        %v523 = vpack.c.bf16 %v466, %v467
        %v524 = vpack.c.bf16 %v464, %v465
        %v525 = vpack.c.bf16 %v462, %v463
        %v526 = vpack.c.bf16 %v460, %v461
        %v527 = vpack.c.bf16 %v458, %v459
        %v528 = vpack.c.bf16 %v456, %v457
        %v529 = vpack.c.bf16 %v454, %v455
        %v530 = vpack.c.bf16 %v452, %v453
        %v531 = vpack.c.bf16 %v450, %v451
        %v532 = vpack.c.bf16 %v448, %v449
        %v533 = vpack.c.bf16 %v446, %v447
        %v534 = vpack.c.bf16 %v444, %v445
        %v535 = vpack.c.bf16 %v442, %v443
        %v536 = vpack.c.bf16 %v440, %v441
        %v537 = vpack.c.bf16 %v438, %v439
        %v538 = vpack.c.bf16 %v436, %v437
        %v539 = vpack.c.bf16 %v434, %v435
        %v540 = vpack.c.bf16 %v504, %v433
        %v541 = vrot.slane %v286, 2
        %v542 = vrot.slane %v287, 2
        %v543 = vrot.slane %v288, 2
        %v544 = vrot.slane %v289, 2
        %v545 = vrot.slane %v290, 2
        %v546 = vrot.slane %v291, 2
        %v547 = vrot.slane %v292, 2
        %v548 = vrot.slane %v293, 2
        %v549 = vrot.slane %v294, 2
        %v550 = vrot.slane %v295, 2
        %v551 = vrot.slane %v296, 2
        %v552 = vrot.slane %v297, 2
        %v553 = vrot.slane %v298, 2
        %v554 = vrot.slane %v299, 2
        %v555 = vrot.slane %v300, 2
        %v556 = vrot.slane %v301, 2
        %v557 = vrot.slane %v302, 2
        %v558 = vrot.slane %v303, 2
        %v559 = vrot.slane %v304, 2
        %v560 = vrot.slane %v305, 2
        %v561 = vrot.slane %v306, 2
        %v562 = vrot.slane %v307, 2
        %v563 = vrot.slane %v308, 2
        %v564 = vrot.slane %v309, 2
        %v565 = vrot.slane %v310, 2
        %v566 = vrot.slane %v311, 2
        %v567 = vrot.slane %v312, 2
        %v568 = vrot.slane %v313, 2
        %v569 = vrot.slane %v314, 2
        %v570 = vrot.slane %v315, 2
        %v571 = vrot.slane %v316, 2
        %v572 = vrot.slane %v317, 2
        %v573 = vrot.slane %v318, 2
        %v574 = vrot.slane %v319, 2
        %v575 = vrot.slane %v320, 2
        %v576 = vrot.slane %v321, 2
        %v577 = vrot.slane %v322, 2
        %v578 = vrot.slane %v323, 2
        %v579 = vrot.slane %v324, 2
        %v580 = vrot.slane %v325, 2
        %v581 = vrot.slane %v326, 2
        %v582 = vrot.slane %v327, 2
        %v583 = vrot.slane %v328, 2
        %v584 = vrot.slane %v329, 2
        %v585 = vrot.slane %v330, 2
        %v586 = vrot.slane %v331, 2
        %v587 = vrot.slane %v332, 2
        %v588 = vrot.slane %v333, 2
        %v589 = vrot.slane %v334, 2
        %v590 = vrot.slane %v335, 2
        %v591 = vrot.slane %v336, 2
        %v592 = vrot.slane %v337, 2
        %v593 = vrot.slane %v338, 2
        %v594 = vrot.slane %v339, 2
        %v595 = vrot.slane %v340, 2
        %v596 = vrot.slane %v341, 2
        %v597 = vrot.slane %v342, 2
        %v598 = vrot.slane %v343, 2
        %v599 = vrot.slane %v344, 2
        %v600 = vrot.slane %v345, 2
        %v601 = vrot.slane %v346, 2
        %v602 = vrot.slane %v347, 2
        %v603 = vrot.slane %v348, 2
        %v604 = vrot.slane %v349, 2
        %v605 = vrot.slane %v350, 2
        %v606 = vrot.slane %v351, 2
        %v607 = vrot.slane %v352, 2
        %v608 = vrot.slane %v353, 2
        %v609 = vrot.slane %v354, 2
        %v610 = vrot.slane %v355, 2
        %v611 = vrot.slane %v356, 2
        %v612 = vrot.slane %v357, 2
        %vm613 = vcmp.lt.s32.totalorder %v431, 6
        %v614 = vsel %vm613, %v611, %v612
        %v615 = vsel %vm613, %v610, %v611
        %v616 = vsel %vm613, %v609, %v610
        %v617 = vsel %vm613, %v608, %v609
        %v618 = vsel %vm613, %v607, %v608
        %v619 = vsel %vm613, %v606, %v607
        %v620 = vsel %vm613, %v605, %v606
        %v621 = vsel %vm613, %v604, %v605
        %v622 = vsel %vm613, %v603, %v604
        %v623 = vsel %vm613, %v602, %v603
        %v624 = vsel %vm613, %v601, %v602
        %v625 = vsel %vm613, %v600, %v601
        %v626 = vsel %vm613, %v599, %v600
        %v627 = vsel %vm613, %v598, %v599
        %v628 = vsel %vm613, %v597, %v598
        %v629 = vsel %vm613, %v596, %v597
        %v630 = vsel %vm613, %v595, %v596
        %v631 = vsel %vm613, %v594, %v595
        %v632 = vsel %vm613, %v593, %v594
        %v633 = vsel %vm613, %v592, %v593
        %v634 = vsel %vm613, %v591, %v592
        %v635 = vsel %vm613, %v590, %v591
        %v636 = vsel %vm613, %v589, %v590
        %v637 = vsel %vm613, %v588, %v589
        %v638 = vsel %vm613, %v587, %v588
        %v639 = vsel %vm613, %v586, %v587
        %v640 = vsel %vm613, %v585, %v586
        %v641 = vsel %vm613, %v584, %v585
        %v642 = vsel %vm613, %v583, %v584
        %v643 = vsel %vm613, %v582, %v583
        %v644 = vsel %vm613, %v581, %v582
        %v645 = vsel %vm613, %v580, %v581
        %v646 = vsel %vm613, %v579, %v580
        %v647 = vsel %vm613, %v578, %v579
        %v648 = vsel %vm613, %v577, %v578
        %v649 = vsel %vm613, %v576, %v577
        %v650 = vsel %vm613, %v575, %v576
        %v651 = vsel %vm613, %v574, %v575
        %v652 = vsel %vm613, %v573, %v574
        %v653 = vsel %vm613, %v572, %v573
        %v654 = vsel %vm613, %v571, %v572
        %v655 = vsel %vm613, %v570, %v571
        %v656 = vsel %vm613, %v569, %v570
        %v657 = vsel %vm613, %v568, %v569
        %v658 = vsel %vm613, %v567, %v568
        %v659 = vsel %vm613, %v566, %v567
        %v660 = vsel %vm613, %v565, %v566
        %v661 = vsel %vm613, %v564, %v565
        %v662 = vsel %vm613, %v563, %v564
        %v663 = vsel %vm613, %v562, %v563
        %v664 = vsel %vm613, %v561, %v562
        %v665 = vsel %vm613, %v560, %v561
        %v666 = vsel %vm613, %v559, %v560
        %v667 = vsel %vm613, %v558, %v559
        %v668 = vsel %vm613, %v557, %v558
        %v669 = vsel %vm613, %v556, %v557
        %v670 = vsel %vm613, %v555, %v556
        %v671 = vsel %vm613, %v554, %v555
        %v672 = vsel %vm613, %v553, %v554
        %v673 = vsel %vm613, %v552, %v553
        %v674 = vsel %vm613, %v551, %v552
        %v675 = vsel %vm613, %v550, %v551
        %v676 = vsel %vm613, %v549, %v550
        %v677 = vsel %vm613, %v548, %v549
        %v678 = vsel %vm613, %v547, %v548
        %v679 = vsel %vm613, %v546, %v547
        %v680 = vsel %vm613, %v545, %v546
        %v681 = vsel %vm613, %v544, %v545
        %v682 = vsel %vm613, %v543, %v544
        %v683 = vsel %vm613, %v542, %v543
        %v684 = vsel %vm613, %v541, %v542
        %v685 = vsel %vm613, %v612, %v541
        %v686 = vpack.c.bf16 %v683, %v684
        %v687 = vpack.c.bf16 %v681, %v682
        %v688 = vpack.c.bf16 %v679, %v680
        %v689 = vpack.c.bf16 %v677, %v678
        %v690 = vpack.c.bf16 %v675, %v676
        %v691 = vpack.c.bf16 %v673, %v674
        %v692 = vpack.c.bf16 %v671, %v672
        %v693 = vpack.c.bf16 %v669, %v670
        %v694 = vpack.c.bf16 %v667, %v668
        %v695 = vpack.c.bf16 %v665, %v666
        %v696 = vpack.c.bf16 %v663, %v664
        %v697 = vpack.c.bf16 %v661, %v662
        %v698 = vpack.c.bf16 %v659, %v660
        %v699 = vpack.c.bf16 %v657, %v658
        %v700 = vpack.c.bf16 %v655, %v656
        %v701 = vpack.c.bf16 %v653, %v654
        %v702 = vpack.c.bf16 %v651, %v652
        %v703 = vpack.c.bf16 %v649, %v650
        %v704 = vpack.c.bf16 %v647, %v648
        %v705 = vpack.c.bf16 %v645, %v646
        %v706 = vpack.c.bf16 %v643, %v644
        %v707 = vpack.c.bf16 %v641, %v642
        %v708 = vpack.c.bf16 %v639, %v640
        %v709 = vpack.c.bf16 %v637, %v638
        %v710 = vpack.c.bf16 %v635, %v636
        %v711 = vpack.c.bf16 %v633, %v634
        %v712 = vpack.c.bf16 %v631, %v632
        %v713 = vpack.c.bf16 %v629, %v630
        %v714 = vpack.c.bf16 %v627, %v628
        %v715 = vpack.c.bf16 %v625, %v626
        %v716 = vpack.c.bf16 %v623, %v624
        %v717 = vpack.c.bf16 %v621, %v622
        %v718 = vpack.c.bf16 %v619, %v620
        %v719 = vpack.c.bf16 %v617, %v618
        %v720 = vpack.c.bf16 %v615, %v616
        %v721 = vpack.c.bf16 %v685, %v614
        %v786 = vunpack.c.l.b16 %v214
        %v787 = vunpack.c.l.b16 %v215
        %v788 = vunpack.c.l.b16 %v216
        %v789 = vunpack.c.l.b16 %v217
        %v790 = vunpack.c.l.b16 %v218
        %v791 = vunpack.c.l.b16 %v219
        %v792 = vunpack.c.l.b16 %v220
        %v793 = vunpack.c.l.b16 %v221
        %v794 = vunpack.c.l.b16 %v222
        %v795 = vunpack.c.l.b16 %v223
        %v796 = vunpack.c.l.b16 %v224
        %v797 = vunpack.c.l.b16 %v225
        %v798 = vunpack.c.l.b16 %v226
        %v799 = vunpack.c.l.b16 %v227
        %v800 = vunpack.c.l.b16 %v228
        %v801 = vunpack.c.l.b16 %v229
        %v802 = vunpack.c.l.b16 %v230
        %v803 = vunpack.c.l.b16 %v231
        %v804 = vunpack.c.l.b16 %v232
        %v805 = vunpack.c.l.b16 %v233
        %v806 = vunpack.c.l.b16 %v234
        %v807 = vunpack.c.l.b16 %v235
        %v808 = vunpack.c.l.b16 %v236
        %v809 = vunpack.c.l.b16 %v237
        %v810 = vunpack.c.l.b16 %v238
        %v811 = vunpack.c.l.b16 %v239
        %v812 = vunpack.c.l.b16 %v240
        %v813 = vunpack.c.l.b16 %v241
        %v814 = vunpack.c.l.b16 %v242
        %v815 = vunpack.c.l.b16 %v243
        %v816 = vunpack.c.l.b16 %v244
        %v817 = vunpack.c.l.b16 %v245
        %v818 = vunpack.c.l.b16 %v246
        %v819 = vunpack.c.l.b16 %v247
        %v820 = vunpack.c.l.b16 %v248
        %v821 = vunpack.c.l.b16 %v249
        %v822 = vunpack.c.l.b16 %v250
        %v823 = vunpack.c.l.b16 %v251
        %v824 = vunpack.c.l.b16 %v252
        %v825 = vunpack.c.l.b16 %v253
        %v826 = vunpack.c.l.b16 %v254
        %v827 = vunpack.c.l.b16 %v255
        %v828 = vunpack.c.l.b16 %v256
        %v829 = vunpack.c.l.b16 %v257
        %v830 = vunpack.c.l.b16 %v258
        %v831 = vunpack.c.l.b16 %v259
        %v832 = vunpack.c.l.b16 %v260
        %v833 = vunpack.c.l.b16 %v261
        %v834 = vunpack.c.l.b16 %v262
        %v835 = vunpack.c.l.b16 %v263
        %v836 = vunpack.c.l.b16 %v264
        %v837 = vunpack.c.l.b16 %v265
        %v838 = vunpack.c.l.b16 %v266
        %v839 = vunpack.c.l.b16 %v267
        %v840 = vunpack.c.l.b16 %v268
        %v841 = vunpack.c.l.b16 %v269
        %v842 = vunpack.c.l.b16 %v270
        %v843 = vunpack.c.l.b16 %v271
        %v844 = vunpack.c.l.b16 %v272
        %v845 = vunpack.c.l.b16 %v273
        %v846 = vunpack.c.l.b16 %v274
        %v847 = vunpack.c.l.b16 %v275
        %v848 = vunpack.c.l.b16 %v276
        %v849 = vunpack.c.l.b16 %v277
        %v850 = vpack.c.b16 %v787, %v786
        %v851 = vpack.c.b16 %v789, %v788
        %v852 = vpack.c.b16 %v791, %v790
        %v853 = vpack.c.b16 %v793, %v792
        %v854 = vpack.c.b16 %v795, %v794
        %v855 = vpack.c.b16 %v797, %v796
        %v856 = vpack.c.b16 %v799, %v798
        %v857 = vpack.c.b16 %v801, %v800
        %v858 = vpack.c.b16 %v803, %v802
        %v859 = vpack.c.b16 %v805, %v804
        %v860 = vpack.c.b16 %v807, %v806
        %v861 = vpack.c.b16 %v809, %v808
        %v862 = vpack.c.b16 %v811, %v810
        %v863 = vpack.c.b16 %v813, %v812
        %v864 = vpack.c.b16 %v815, %v814
        %v865 = vpack.c.b16 %v817, %v816
        %v866 = vpack.c.b16 %v819, %v818
        %v867 = vpack.c.b16 %v821, %v820
        %v868 = vpack.c.b16 %v823, %v822
        %v869 = vpack.c.b16 %v825, %v824
        %v870 = vpack.c.b16 %v827, %v826
        %v871 = vpack.c.b16 %v829, %v828
        %v872 = vpack.c.b16 %v831, %v830
        %v873 = vpack.c.b16 %v833, %v832
        %v874 = vpack.c.b16 %v835, %v834
        %v875 = vpack.c.b16 %v837, %v836
        %v876 = vpack.c.b16 %v839, %v838
        %v877 = vpack.c.b16 %v841, %v840
        %v878 = vpack.c.b16 %v843, %v842
        %v879 = vpack.c.b16 %v845, %v844
        %v880 = vpack.c.b16 %v847, %v846
        %v881 = vpack.c.b16 %v849, %v848
        %914 = vrot.lane.b32.xlu0 %v505, 4
        %v915 = vpop.permute.xlu0 %914
        %916 = vrot.lane.b32.xlu0 %v506, 4
        %v917 = vpop.permute.xlu0 %916
        %918 = vrot.lane.b32.xlu0 %v507, 4
        %v919 = vpop.permute.xlu0 %918
        %920 = vrot.lane.b32.xlu0 %v508, 4
        %v921 = vpop.permute.xlu0 %920
        %922 = vrot.lane.b32.xlu0 %v509, 4
        %v923 = vpop.permute.xlu0 %922
        %924 = vrot.lane.b32.xlu0 %v510, 4
        %v925 = vpop.permute.xlu0 %924
        %926 = vrot.lane.b32.xlu0 %v511, 4
        %v927 = vpop.permute.xlu0 %926
        %928 = vrot.lane.b32.xlu0 %v512, 4
        %v929 = vpop.permute.xlu0 %928
        %930 = vrot.lane.b32.xlu0 %v513, 4
        %v931 = vpop.permute.xlu0 %930
        %932 = vrot.lane.b32.xlu0 %v514, 4
        %v933 = vpop.permute.xlu0 %932
        %934 = vrot.lane.b32.xlu0 %v515, 4
        %v935 = vpop.permute.xlu0 %934
        %936 = vrot.lane.b32.xlu0 %v516, 4
        %v937 = vpop.permute.xlu0 %936
        %938 = vrot.lane.b32.xlu0 %v517, 4
        %v939 = vpop.permute.xlu0 %938
        %940 = vrot.lane.b32.xlu0 %v518, 4
        %v941 = vpop.permute.xlu0 %940
        %942 = vrot.lane.b32.xlu0 %v519, 4
        %v943 = vpop.permute.xlu0 %942
        %944 = vrot.lane.b32.xlu0 %v520, 4
        %v945 = vpop.permute.xlu0 %944
        %946 = vrot.lane.b32.xlu0 %v521, 4
        %v947 = vpop.permute.xlu0 %946
        %948 = vrot.lane.b32.xlu0 %v522, 4
        %v949 = vpop.permute.xlu0 %948
        %950 = vrot.lane.b32.xlu0 %v523, 4
        %v951 = vpop.permute.xlu0 %950
        %952 = vrot.lane.b32.xlu0 %v524, 4
        %v953 = vpop.permute.xlu0 %952
        %954 = vrot.lane.b32.xlu0 %v525, 4
        %v955 = vpop.permute.xlu0 %954
        %956 = vrot.lane.b32.xlu0 %v526, 4
        %v957 = vpop.permute.xlu0 %956
        %958 = vrot.lane.b32.xlu0 %v527, 4
        %v959 = vpop.permute.xlu0 %958
        %960 = vrot.lane.b32.xlu0 %v528, 4
        %v961 = vpop.permute.xlu0 %960
        %962 = vrot.lane.b32.xlu0 %v529, 4
        %v963 = vpop.permute.xlu0 %962
        %964 = vrot.lane.b32.xlu0 %v530, 4
        %v965 = vpop.permute.xlu0 %964
        %966 = vrot.lane.b32.xlu0 %v531, 4
        %v967 = vpop.permute.xlu0 %966
        %968 = vrot.lane.b32.xlu0 %v532, 4
        %v969 = vpop.permute.xlu0 %968
        %970 = vrot.lane.b32.xlu0 %v533, 4
        %v971 = vpop.permute.xlu0 %970
        %972 = vrot.lane.b32.xlu0 %v534, 4
        %v973 = vpop.permute.xlu0 %972
        %974 = vrot.lane.b32.xlu0 %v535, 4
        %v975 = vpop.permute.xlu0 %974
        %976 = vrot.lane.b32.xlu0 %v536, 4
        %v977 = vpop.permute.xlu0 %976
        %1010 = vrot.lane.b32.xlu0 %v686, 8
        %v1011 = vpop.permute.xlu0 %1010
        %1012 = vrot.lane.b32.xlu0 %v687, 8
        %v1013 = vpop.permute.xlu0 %1012
        %1014 = vrot.lane.b32.xlu0 %v688, 8
        %v1015 = vpop.permute.xlu0 %1014
        %1016 = vrot.lane.b32.xlu0 %v689, 8
        %v1017 = vpop.permute.xlu0 %1016
        %1018 = vrot.lane.b32.xlu0 %v690, 8
        %v1019 = vpop.permute.xlu0 %1018
        %1020 = vrot.lane.b32.xlu0 %v691, 8
        %v1021 = vpop.permute.xlu0 %1020
        %1022 = vrot.lane.b32.xlu0 %v692, 8
        %v1023 = vpop.permute.xlu0 %1022
        %1024 = vrot.lane.b32.xlu0 %v693, 8
        %v1025 = vpop.permute.xlu0 %1024
        %1026 = vrot.lane.b32.xlu0 %v694, 8
        %v1027 = vpop.permute.xlu0 %1026
        %1028 = vrot.lane.b32.xlu0 %v695, 8
        %v1029 = vpop.permute.xlu0 %1028
        %1030 = vrot.lane.b32.xlu0 %v696, 8
        %v1031 = vpop.permute.xlu0 %1030
        %1032 = vrot.lane.b32.xlu0 %v697, 8
        %v1033 = vpop.permute.xlu0 %1032
        %1034 = vrot.lane.b32.xlu0 %v698, 8
        %v1035 = vpop.permute.xlu0 %1034
        %1036 = vrot.lane.b32.xlu0 %v699, 8
        %v1037 = vpop.permute.xlu0 %1036
        %1038 = vrot.lane.b32.xlu0 %v700, 8
        %v1039 = vpop.permute.xlu0 %1038
        %1040 = vrot.lane.b32.xlu0 %v701, 8
        %v1041 = vpop.permute.xlu0 %1040
        %1042 = vrot.lane.b32.xlu0 %v702, 8
        %v1043 = vpop.permute.xlu0 %1042
        %1044 = vrot.lane.b32.xlu0 %v703, 8
        %v1045 = vpop.permute.xlu0 %1044
        %1046 = vrot.lane.b32.xlu0 %v704, 8
        %v1047 = vpop.permute.xlu0 %1046
        %1048 = vrot.lane.b32.xlu0 %v705, 8
        %v1049 = vpop.permute.xlu0 %1048
        %1050 = vrot.lane.b32.xlu0 %v706, 8
        %v1051 = vpop.permute.xlu0 %1050
        %1052 = vrot.lane.b32.xlu0 %v707, 8
        %v1053 = vpop.permute.xlu0 %1052
        %1054 = vrot.lane.b32.xlu0 %v708, 8
        %v1055 = vpop.permute.xlu0 %1054
        %1056 = vrot.lane.b32.xlu0 %v709, 8
        %v1057 = vpop.permute.xlu0 %1056
        %1058 = vrot.lane.b32.xlu0 %v710, 8
        %v1059 = vpop.permute.xlu0 %1058
        %1060 = vrot.lane.b32.xlu0 %v711, 8
        %v1061 = vpop.permute.xlu0 %1060
        %1062 = vrot.lane.b32.xlu0 %v712, 8
        %v1063 = vpop.permute.xlu0 %1062
        %1064 = vrot.lane.b32.xlu0 %v713, 8
        %v1065 = vpop.permute.xlu0 %1064
        %1066 = vrot.lane.b32.xlu0 %v714, 8
        %v1067 = vpop.permute.xlu0 %1066
        %1068 = vrot.lane.b32.xlu0 %v715, 8
        %v1069 = vpop.permute.xlu0 %1068
        %1070 = vrot.lane.b32.xlu0 %v716, 8
        %v1071 = vpop.permute.xlu0 %1070
        %1072 = vrot.lane.b32.xlu0 %v717, 8
        %v1073 = vpop.permute.xlu0 %1072
        %v1078 = vunpack.c.l.b16 %v278
        %v1079 = vunpack.c.l.b16 %v279
        %v1080 = vunpack.c.l.b16 %v280
        %v1081 = vunpack.c.l.b16 %v281
        %v1082 = vpack.c.b16 %v1079, %v1078
        %v1083 = vpack.c.b16 %v1081, %v1080
        %1084 = vrot.lane.b32.xlu0 %v852, 12
        %v1085 = vpop.permute.xlu0 %1084
        %1086 = vrot.lane.b32.xlu0 %v853, 12
        %v1087 = vpop.permute.xlu0 %1086
        %1088 = vrot.lane.b32.xlu0 %v854, 12
        %v1089 = vpop.permute.xlu0 %1088
        %1090 = vrot.lane.b32.xlu0 %v855, 12
        %v1091 = vpop.permute.xlu0 %1090
        %1092 = vrot.lane.b32.xlu0 %v856, 12
        %v1093 = vpop.permute.xlu0 %1092
        %1094 = vrot.lane.b32.xlu0 %v857, 12
        %v1095 = vpop.permute.xlu0 %1094
        %1096 = vrot.lane.b32.xlu0 %v858, 12
        %v1097 = vpop.permute.xlu0 %1096
        %1098 = vrot.lane.b32.xlu0 %v859, 12
        %v1099 = vpop.permute.xlu0 %1098
        %1100 = vrot.lane.b32.xlu0 %v860, 12
        %v1101 = vpop.permute.xlu0 %1100
        %1102 = vrot.lane.b32.xlu0 %v861, 12
        %v1103 = vpop.permute.xlu0 %1102
        %1104 = vrot.lane.b32.xlu0 %v862, 12
        %v1105 = vpop.permute.xlu0 %1104
        %1106 = vrot.lane.b32.xlu0 %v863, 12
        %v1107 = vpop.permute.xlu0 %1106
        %1108 = vrot.lane.b32.xlu0 %v864, 12
        %v1109 = vpop.permute.xlu0 %1108
        %1110 = vrot.lane.b32.xlu0 %v865, 12
        %v1111 = vpop.permute.xlu0 %1110
        %1112 = vrot.lane.b32.xlu0 %v866, 12
        %v1113 = vpop.permute.xlu0 %1112
        %1114 = vrot.lane.b32.xlu0 %v867, 12
        %v1115 = vpop.permute.xlu0 %1114
        %1116 = vrot.lane.b32.xlu0 %v868, 12
        %v1117 = vpop.permute.xlu0 %1116
        %1118 = vrot.lane.b32.xlu0 %v869, 12
        %v1119 = vpop.permute.xlu0 %1118
        %1120 = vrot.lane.b32.xlu0 %v870, 12
        %v1121 = vpop.permute.xlu0 %1120
        %1122 = vrot.lane.b32.xlu0 %v871, 12
        %v1123 = vpop.permute.xlu0 %1122
        %1124 = vrot.lane.b32.xlu0 %v872, 12
        %v1125 = vpop.permute.xlu0 %1124
        %1126 = vrot.lane.b32.xlu0 %v873, 12
        %v1127 = vpop.permute.xlu0 %1126
        %1128 = vrot.lane.b32.xlu0 %v874, 12
        %v1129 = vpop.permute.xlu0 %1128
        %1130 = vrot.lane.b32.xlu0 %v875, 12
        %v1131 = vpop.permute.xlu0 %1130
        %1132 = vrot.lane.b32.xlu0 %v876, 12
        %v1133 = vpop.permute.xlu0 %1132
        %1134 = vrot.lane.b32.xlu0 %v877, 12
        %v1135 = vpop.permute.xlu0 %1134
        %1136 = vrot.lane.b32.xlu0 %v878, 12
        %v1137 = vpop.permute.xlu0 %1136
        %1138 = vrot.lane.b32.xlu0 %v879, 12
        %v1139 = vpop.permute.xlu0 %1138
        %1140 = vrot.lane.b32.xlu0 %v880, 12
        %v1141 = vpop.permute.xlu0 %1140
        %1142 = vrot.lane.b32.xlu0 %v881, 12
        %v1143 = vpop.permute.xlu0 %1142
        %1144 = vrot.lane.b32.xlu0 %v1082, 12
        %v1145 = vpop.permute.xlu0 %1144
        %1146 = vrot.lane.b32.xlu0 %v1083, 12
        %v1147 = vpop.permute.xlu0 %1146
        %1150 = vrot.lane.b32.xlu0 %v507, 16
        %v1151 = vpop.permute.xlu0 %1150
        %1152 = vrot.lane.b32.xlu0 %v508, 16
        %v1153 = vpop.permute.xlu0 %1152
        %1154 = vrot.lane.b32.xlu0 %v509, 16
        %v1155 = vpop.permute.xlu0 %1154
        %1156 = vrot.lane.b32.xlu0 %v510, 16
        %v1157 = vpop.permute.xlu0 %1156
        %1158 = vrot.lane.b32.xlu0 %v511, 16
        %v1159 = vpop.permute.xlu0 %1158
        %1160 = vrot.lane.b32.xlu0 %v512, 16
        %v1161 = vpop.permute.xlu0 %1160
        %1162 = vrot.lane.b32.xlu0 %v513, 16
        %v1163 = vpop.permute.xlu0 %1162
        %1164 = vrot.lane.b32.xlu0 %v514, 16
        %v1165 = vpop.permute.xlu0 %1164
        %1166 = vrot.lane.b32.xlu0 %v515, 16
        %v1167 = vpop.permute.xlu0 %1166
        %1168 = vrot.lane.b32.xlu0 %v516, 16
        %v1169 = vpop.permute.xlu0 %1168
        %1170 = vrot.lane.b32.xlu0 %v517, 16
        %v1171 = vpop.permute.xlu0 %1170
        %1172 = vrot.lane.b32.xlu0 %v518, 16
        %v1173 = vpop.permute.xlu0 %1172
        %1174 = vrot.lane.b32.xlu0 %v519, 16
        %v1175 = vpop.permute.xlu0 %1174
        %1176 = vrot.lane.b32.xlu0 %v520, 16
        %v1177 = vpop.permute.xlu0 %1176
        %1178 = vrot.lane.b32.xlu0 %v521, 16
        %v1179 = vpop.permute.xlu0 %1178
        %1180 = vrot.lane.b32.xlu0 %v522, 16
        %v1181 = vpop.permute.xlu0 %1180
        %1182 = vrot.lane.b32.xlu0 %v523, 16
        %v1183 = vpop.permute.xlu0 %1182
        %1184 = vrot.lane.b32.xlu0 %v524, 16
        %v1185 = vpop.permute.xlu0 %1184
        %1186 = vrot.lane.b32.xlu0 %v525, 16
        %v1187 = vpop.permute.xlu0 %1186
        %1188 = vrot.lane.b32.xlu0 %v526, 16
        %v1189 = vpop.permute.xlu0 %1188
        %1190 = vrot.lane.b32.xlu0 %v527, 16
        %v1191 = vpop.permute.xlu0 %1190
        %1192 = vrot.lane.b32.xlu0 %v528, 16
        %v1193 = vpop.permute.xlu0 %1192
        %1194 = vrot.lane.b32.xlu0 %v529, 16
        %v1195 = vpop.permute.xlu0 %1194
        %1196 = vrot.lane.b32.xlu0 %v530, 16
        %v1197 = vpop.permute.xlu0 %1196
        %1198 = vrot.lane.b32.xlu0 %v531, 16
        %v1199 = vpop.permute.xlu0 %1198
        %1200 = vrot.lane.b32.xlu0 %v532, 16
        %v1201 = vpop.permute.xlu0 %1200
        %1202 = vrot.lane.b32.xlu0 %v533, 16
        %v1203 = vpop.permute.xlu0 %1202
        %1204 = vrot.lane.b32.xlu0 %v534, 16
        %v1205 = vpop.permute.xlu0 %1204
        %1206 = vrot.lane.b32.xlu0 %v535, 16
        %v1207 = vpop.permute.xlu0 %1206
        %1208 = vrot.lane.b32.xlu0 %v536, 16
        %v1209 = vpop.permute.xlu0 %1208
        %1210 = vrot.lane.b32.xlu0 %v537, 16
        %v1211 = vpop.permute.xlu0 %1210
        %1212 = vrot.lane.b32.xlu0 %v538, 16
        %v1213 = vpop.permute.xlu0 %1212
        %1216 = vrot.lane.b32.xlu0 %v688, 20
        %v1217 = vpop.permute.xlu0 %1216
        %1218 = vrot.lane.b32.xlu0 %v689, 20
        %v1219 = vpop.permute.xlu0 %1218
        %1220 = vrot.lane.b32.xlu0 %v690, 20
        %v1221 = vpop.permute.xlu0 %1220
        %1222 = vrot.lane.b32.xlu0 %v691, 20
        %v1223 = vpop.permute.xlu0 %1222
        %1224 = vrot.lane.b32.xlu0 %v692, 20
        %v1225 = vpop.permute.xlu0 %1224
        %1226 = vrot.lane.b32.xlu0 %v693, 20
        %v1227 = vpop.permute.xlu0 %1226
        %1228 = vrot.lane.b32.xlu0 %v694, 20
        %v1229 = vpop.permute.xlu0 %1228
        %1230 = vrot.lane.b32.xlu0 %v695, 20
        %v1231 = vpop.permute.xlu0 %1230
        %1232 = vrot.lane.b32.xlu0 %v696, 20
        %v1233 = vpop.permute.xlu0 %1232
        %1234 = vrot.lane.b32.xlu0 %v697, 20
        %v1235 = vpop.permute.xlu0 %1234
        %1236 = vrot.lane.b32.xlu0 %v698, 20
        %v1237 = vpop.permute.xlu0 %1236
        %1238 = vrot.lane.b32.xlu0 %v699, 20
        %v1239 = vpop.permute.xlu0 %1238
        %1240 = vrot.lane.b32.xlu0 %v700, 20
        %v1241 = vpop.permute.xlu0 %1240
        %1242 = vrot.lane.b32.xlu0 %v701, 20
        %v1243 = vpop.permute.xlu0 %1242
        %1244 = vrot.lane.b32.xlu0 %v702, 20
        %v1245 = vpop.permute.xlu0 %1244
        %1246 = vrot.lane.b32.xlu0 %v703, 20
        %v1247 = vpop.permute.xlu0 %1246
        %1248 = vrot.lane.b32.xlu0 %v704, 20
        %v1249 = vpop.permute.xlu0 %1248
        %1250 = vrot.lane.b32.xlu0 %v705, 20
        %v1251 = vpop.permute.xlu0 %1250
        %1252 = vrot.lane.b32.xlu0 %v706, 20
        %v1253 = vpop.permute.xlu0 %1252
        %1254 = vrot.lane.b32.xlu0 %v707, 20
        %v1255 = vpop.permute.xlu0 %1254
        %1256 = vrot.lane.b32.xlu0 %v708, 20
        %v1257 = vpop.permute.xlu0 %1256
        %1258 = vrot.lane.b32.xlu0 %v709, 20
        %v1259 = vpop.permute.xlu0 %1258
        %1260 = vrot.lane.b32.xlu0 %v710, 20
        %v1261 = vpop.permute.xlu0 %1260
        %1262 = vrot.lane.b32.xlu0 %v711, 20
        %v1263 = vpop.permute.xlu0 %1262
        %1264 = vrot.lane.b32.xlu0 %v712, 20
        %v1265 = vpop.permute.xlu0 %1264
        %1266 = vrot.lane.b32.xlu0 %v713, 20
        %v1267 = vpop.permute.xlu0 %1266
        %1268 = vrot.lane.b32.xlu0 %v714, 20
        %v1269 = vpop.permute.xlu0 %1268
        %1270 = vrot.lane.b32.xlu0 %v715, 20
        %v1271 = vpop.permute.xlu0 %1270
        %1272 = vrot.lane.b32.xlu0 %v716, 20
        %v1273 = vpop.permute.xlu0 %1272
        %1274 = vrot.lane.b32.xlu0 %v717, 20
        %v1275 = vpop.permute.xlu0 %1274
        %1276 = vrot.lane.b32.xlu0 %v718, 20
        %v1277 = vpop.permute.xlu0 %1276
        %1278 = vrot.lane.b32.xlu0 %v719, 20
        %v1279 = vpop.permute.xlu0 %1278
        %v1284 = vunpack.c.l.b16 %v282
        %v1285 = vunpack.c.l.b16 %v283
        %v1286 = vunpack.c.l.b16 %v284
        %v1287 = vunpack.c.l.b16 %v285
        %v1288 = vpack.c.b16 %v1285, %v1284
        %v1289 = vpack.c.b16 %v1287, %v1286
        %1290 = vrot.lane.b32.xlu0 %v854, 24
        %v1291 = vpop.permute.xlu0 %1290
        %1292 = vrot.lane.b32.xlu0 %v855, 24
        %v1293 = vpop.permute.xlu0 %1292
        %1294 = vrot.lane.b32.xlu0 %v856, 24
        %v1295 = vpop.permute.xlu0 %1294
        %1296 = vrot.lane.b32.xlu0 %v857, 24
        %v1297 = vpop.permute.xlu0 %1296
        %1298 = vrot.lane.b32.xlu0 %v858, 24
        %v1299 = vpop.permute.xlu0 %1298
        %1300 = vrot.lane.b32.xlu0 %v859, 24
        %v1301 = vpop.permute.xlu0 %1300
        %1302 = vrot.lane.b32.xlu0 %v860, 24
        %v1303 = vpop.permute.xlu0 %1302
        %1304 = vrot.lane.b32.xlu0 %v861, 24
        %v1305 = vpop.permute.xlu0 %1304
        %1306 = vrot.lane.b32.xlu0 %v862, 24
        %v1307 = vpop.permute.xlu0 %1306
        %1308 = vrot.lane.b32.xlu0 %v863, 24
        %v1309 = vpop.permute.xlu0 %1308
        %1310 = vrot.lane.b32.xlu0 %v864, 24
        %v1311 = vpop.permute.xlu0 %1310
        %1312 = vrot.lane.b32.xlu0 %v865, 24
        %v1313 = vpop.permute.xlu0 %1312
        %1314 = vrot.lane.b32.xlu0 %v866, 24
        %v1315 = vpop.permute.xlu0 %1314
        %1316 = vrot.lane.b32.xlu0 %v867, 24
        %v1317 = vpop.permute.xlu0 %1316
        %1318 = vrot.lane.b32.xlu0 %v868, 24
        %v1319 = vpop.permute.xlu0 %1318
        %1320 = vrot.lane.b32.xlu0 %v869, 24
        %v1321 = vpop.permute.xlu0 %1320
        %1322 = vrot.lane.b32.xlu0 %v870, 24
        %v1323 = vpop.permute.xlu0 %1322
        %1324 = vrot.lane.b32.xlu0 %v871, 24
        %v1325 = vpop.permute.xlu0 %1324
        %1326 = vrot.lane.b32.xlu0 %v872, 24
        %v1327 = vpop.permute.xlu0 %1326
        %1328 = vrot.lane.b32.xlu0 %v873, 24
        %v1329 = vpop.permute.xlu0 %1328
        %1330 = vrot.lane.b32.xlu0 %v874, 24
        %v1331 = vpop.permute.xlu0 %1330
        %1332 = vrot.lane.b32.xlu0 %v875, 24
        %v1333 = vpop.permute.xlu0 %1332
        %1334 = vrot.lane.b32.xlu0 %v876, 24
        %v1335 = vpop.permute.xlu0 %1334
        %1336 = vrot.lane.b32.xlu0 %v877, 24
        %v1337 = vpop.permute.xlu0 %1336
        %1338 = vrot.lane.b32.xlu0 %v878, 24
        %v1339 = vpop.permute.xlu0 %1338
        %1340 = vrot.lane.b32.xlu0 %v879, 24
        %v1341 = vpop.permute.xlu0 %1340
        %1342 = vrot.lane.b32.xlu0 %v880, 24
        %v1343 = vpop.permute.xlu0 %1342
        %1344 = vrot.lane.b32.xlu0 %v881, 24
        %v1345 = vpop.permute.xlu0 %1344
        %1346 = vrot.lane.b32.xlu0 %v1082, 24
        %v1347 = vpop.permute.xlu0 %1346
        %1348 = vrot.lane.b32.xlu0 %v1083, 24
        %v1349 = vpop.permute.xlu0 %1348
        %1350 = vrot.lane.b32.xlu0 %v1288, 24
        %v1351 = vpop.permute.xlu0 %1350
        %1352 = vrot.lane.b32.xlu0 %v1289, 24
        %v1353 = vpop.permute.xlu0 %1352
        %1356 = vrot.lane.b32.xlu0 %v509, 28
        %v1357 = vpop.permute.xlu0 %1356
        %1358 = vrot.lane.b32.xlu0 %v510, 28
        %v1359 = vpop.permute.xlu0 %1358
        %1360 = vrot.lane.b32.xlu0 %v511, 28
        %v1361 = vpop.permute.xlu0 %1360
        %1362 = vrot.lane.b32.xlu0 %v512, 28
        %v1363 = vpop.permute.xlu0 %1362
        %1364 = vrot.lane.b32.xlu0 %v513, 28
        %v1365 = vpop.permute.xlu0 %1364
        %1366 = vrot.lane.b32.xlu0 %v514, 28
        %v1367 = vpop.permute.xlu0 %1366
        %1368 = vrot.lane.b32.xlu0 %v515, 28
        %v1369 = vpop.permute.xlu0 %1368
        %1370 = vrot.lane.b32.xlu0 %v516, 28
        %v1371 = vpop.permute.xlu0 %1370
        %1372 = vrot.lane.b32.xlu0 %v517, 28
        %v1373 = vpop.permute.xlu0 %1372
        %1374 = vrot.lane.b32.xlu0 %v518, 28
        %v1375 = vpop.permute.xlu0 %1374
        %1376 = vrot.lane.b32.xlu0 %v519, 28
        %v1377 = vpop.permute.xlu0 %1376
        %1378 = vrot.lane.b32.xlu0 %v520, 28
        %v1379 = vpop.permute.xlu0 %1378
        %1380 = vrot.lane.b32.xlu0 %v521, 28
        %v1381 = vpop.permute.xlu0 %1380
        %1382 = vrot.lane.b32.xlu0 %v522, 28
        %v1383 = vpop.permute.xlu0 %1382
        %1384 = vrot.lane.b32.xlu0 %v523, 28
        %v1385 = vpop.permute.xlu0 %1384
        %1386 = vrot.lane.b32.xlu0 %v524, 28
        %v1387 = vpop.permute.xlu0 %1386
        %1388 = vrot.lane.b32.xlu0 %v525, 28
        %v1389 = vpop.permute.xlu0 %1388
        %1390 = vrot.lane.b32.xlu0 %v526, 28
        %v1391 = vpop.permute.xlu0 %1390
        %1392 = vrot.lane.b32.xlu0 %v527, 28
        %v1393 = vpop.permute.xlu0 %1392
        %1394 = vrot.lane.b32.xlu0 %v528, 28
        %v1395 = vpop.permute.xlu0 %1394
        %1396 = vrot.lane.b32.xlu0 %v529, 28
        %v1397 = vpop.permute.xlu0 %1396
        %1398 = vrot.lane.b32.xlu0 %v530, 28
        %v1399 = vpop.permute.xlu0 %1398
        %1400 = vrot.lane.b32.xlu0 %v531, 28
        %v1401 = vpop.permute.xlu0 %1400
        %1402 = vrot.lane.b32.xlu0 %v532, 28
        %v1403 = vpop.permute.xlu0 %1402
        %1404 = vrot.lane.b32.xlu0 %v533, 28
        %v1405 = vpop.permute.xlu0 %1404
        %1406 = vrot.lane.b32.xlu0 %v534, 28
        %v1407 = vpop.permute.xlu0 %1406
        %1408 = vrot.lane.b32.xlu0 %v535, 28
        %v1409 = vpop.permute.xlu0 %1408
        %1410 = vrot.lane.b32.xlu0 %v536, 28
        %v1411 = vpop.permute.xlu0 %1410
        %1412 = vrot.lane.b32.xlu0 %v537, 28
        %v1413 = vpop.permute.xlu0 %1412
        %1414 = vrot.lane.b32.xlu0 %v538, 28
        %v1415 = vpop.permute.xlu0 %1414
        %1416 = vrot.lane.b32.xlu0 %v539, 28
        %v1417 = vpop.permute.xlu0 %1416
        %1418 = vrot.lane.b32.xlu0 %v540, 28
        %v1419 = vpop.permute.xlu0 %1418
        %1422 = vrot.lane.b32.xlu0 %v690, 32
        %v1423 = vpop.permute.xlu0 %1422
        %1424 = vrot.lane.b32.xlu0 %v691, 32
        %v1425 = vpop.permute.xlu0 %1424
        %1426 = vrot.lane.b32.xlu0 %v692, 32
        %v1427 = vpop.permute.xlu0 %1426
        %1428 = vrot.lane.b32.xlu0 %v693, 32
        %v1429 = vpop.permute.xlu0 %1428
        %1430 = vrot.lane.b32.xlu0 %v694, 32
        %v1431 = vpop.permute.xlu0 %1430
        %1432 = vrot.lane.b32.xlu0 %v695, 32
        %v1433 = vpop.permute.xlu0 %1432
        %1434 = vrot.lane.b32.xlu0 %v696, 32
        %v1435 = vpop.permute.xlu0 %1434
        %1436 = vrot.lane.b32.xlu0 %v697, 32
        %v1437 = vpop.permute.xlu0 %1436
        %1438 = vrot.lane.b32.xlu0 %v698, 32
        %v1439 = vpop.permute.xlu0 %1438
        %1440 = vrot.lane.b32.xlu0 %v699, 32
        %v1441 = vpop.permute.xlu0 %1440
        %1442 = vrot.lane.b32.xlu0 %v700, 32
        %v1443 = vpop.permute.xlu0 %1442
        %1444 = vrot.lane.b32.xlu0 %v701, 32
        %v1445 = vpop.permute.xlu0 %1444
        %1446 = vrot.lane.b32.xlu0 %v702, 32
        %v1447 = vpop.permute.xlu0 %1446
        %1448 = vrot.lane.b32.xlu0 %v703, 32
        %v1449 = vpop.permute.xlu0 %1448
        %1450 = vrot.lane.b32.xlu0 %v704, 32
        %v1451 = vpop.permute.xlu0 %1450
        %1452 = vrot.lane.b32.xlu0 %v705, 32
        %v1453 = vpop.permute.xlu0 %1452
        %1454 = vrot.lane.b32.xlu0 %v706, 32
        %v1455 = vpop.permute.xlu0 %1454
        %1456 = vrot.lane.b32.xlu0 %v707, 32
        %v1457 = vpop.permute.xlu0 %1456
        %1458 = vrot.lane.b32.xlu0 %v708, 32
        %v1459 = vpop.permute.xlu0 %1458
        %1460 = vrot.lane.b32.xlu0 %v709, 32
        %v1461 = vpop.permute.xlu0 %1460
        %1462 = vrot.lane.b32.xlu0 %v710, 32
        %v1463 = vpop.permute.xlu0 %1462
        %1464 = vrot.lane.b32.xlu0 %v711, 32
        %v1465 = vpop.permute.xlu0 %1464
        %1466 = vrot.lane.b32.xlu0 %v712, 32
        %v1467 = vpop.permute.xlu0 %1466
        %1468 = vrot.lane.b32.xlu0 %v713, 32
        %v1469 = vpop.permute.xlu0 %1468
        %1470 = vrot.lane.b32.xlu0 %v714, 32
        %v1471 = vpop.permute.xlu0 %1470
        %1472 = vrot.lane.b32.xlu0 %v715, 32
        %v1473 = vpop.permute.xlu0 %1472
        %1474 = vrot.lane.b32.xlu0 %v716, 32
        %v1475 = vpop.permute.xlu0 %1474
        %1476 = vrot.lane.b32.xlu0 %v717, 32
        %v1477 = vpop.permute.xlu0 %1476
        %1478 = vrot.lane.b32.xlu0 %v718, 32
        %v1479 = vpop.permute.xlu0 %1478
        %1480 = vrot.lane.b32.xlu0 %v719, 32
        %v1481 = vpop.permute.xlu0 %1480
        %1482 = vrot.lane.b32.xlu0 %v720, 32
        %v1483 = vpop.permute.xlu0 %1482
        %1484 = vrot.lane.b32.xlu0 %v721, 32
        %v1485 = vpop.permute.xlu0 %1484
        %vm1486 = vcmask 31744
        %v1489 = vsel %vm1486, %v850, %v915
        %v1492 = vsel %vm1486, %v851, %v917
        %v1495 = vsel %vm1486, %v852, %v919
        %v1498 = vsel %vm1486, %v853, %v921
        %v1501 = vsel %vm1486, %v854, %v923
        %v1504 = vsel %vm1486, %v855, %v925
        %v1507 = vsel %vm1486, %v856, %v927
        %v1510 = vsel %vm1486, %v857, %v929
        %v1513 = vsel %vm1486, %v858, %v931
        %v1516 = vsel %vm1486, %v859, %v933
        %v1519 = vsel %vm1486, %v860, %v935
        %v1522 = vsel %vm1486, %v861, %v937
        %v1525 = vsel %vm1486, %v862, %v939
        %v1528 = vsel %vm1486, %v863, %v941
        %v1531 = vsel %vm1486, %v864, %v943
        %v1534 = vsel %vm1486, %v865, %v945
        %v1537 = vsel %vm1486, %v866, %v947
        %v1540 = vsel %vm1486, %v867, %v949
        %v1543 = vsel %vm1486, %v868, %v951
        %v1546 = vsel %vm1486, %v869, %v953
        %v1549 = vsel %vm1486, %v870, %v955
        %v1552 = vsel %vm1486, %v871, %v957
        %v1555 = vsel %vm1486, %v872, %v959
        %v1558 = vsel %vm1486, %v873, %v961
        %v1561 = vsel %vm1486, %v874, %v963
        %v1564 = vsel %vm1486, %v875, %v965
        %v1567 = vsel %vm1486, %v876, %v967
        %v1570 = vsel %vm1486, %v877, %v969
        %v1573 = vsel %vm1486, %v878, %v971
        %v1576 = vsel %vm1486, %v879, %v973
        %v1579 = vsel %vm1486, %v880, %v975
        %v1582 = vsel %vm1486, %v881, %v977
        %vm1583 = vcmask 64512
        %v1585 = vsel %vm1583, %v1489, %v1011
        %v1587 = vsel %vm1583, %v1492, %v1013
        %v1589 = vsel %vm1583, %v1495, %v1015
        %v1591 = vsel %vm1583, %v1498, %v1017
        %v1593 = vsel %vm1583, %v1501, %v1019
        %v1595 = vsel %vm1583, %v1504, %v1021
        %v1597 = vsel %vm1583, %v1507, %v1023
        %v1599 = vsel %vm1583, %v1510, %v1025
        %v1601 = vsel %vm1583, %v1513, %v1027
        %v1603 = vsel %vm1583, %v1516, %v1029
        %v1605 = vsel %vm1583, %v1519, %v1031
        %v1607 = vsel %vm1583, %v1522, %v1033
        %v1609 = vsel %vm1583, %v1525, %v1035
        %v1611 = vsel %vm1583, %v1528, %v1037
        %v1613 = vsel %vm1583, %v1531, %v1039
        %v1615 = vsel %vm1583, %v1534, %v1041
        %v1617 = vsel %vm1583, %v1537, %v1043
        %v1619 = vsel %vm1583, %v1540, %v1045
        %v1621 = vsel %vm1583, %v1543, %v1047
        %v1623 = vsel %vm1583, %v1546, %v1049
        %v1625 = vsel %vm1583, %v1549, %v1051
        %v1627 = vsel %vm1583, %v1552, %v1053
        %v1629 = vsel %vm1583, %v1555, %v1055
        %v1631 = vsel %vm1583, %v1558, %v1057
        %v1633 = vsel %vm1583, %v1561, %v1059
        %v1635 = vsel %vm1583, %v1564, %v1061
        %v1637 = vsel %vm1583, %v1567, %v1063
        %v1639 = vsel %vm1583, %v1570, %v1065
        %v1641 = vsel %vm1583, %v1573, %v1067
        %v1643 = vsel %vm1583, %v1576, %v1069
        %v1645 = vsel %vm1583, %v1579, %v1071
        %v1647 = vsel %vm1583, %v1582, %v1073
        %vm1648 = vcmask 97280
        %v1650 = vsel %vm1648, %v1585, %v1085
        %v1652 = vsel %vm1648, %v1587, %v1087
        %v1654 = vsel %vm1648, %v1589, %v1089
        %v1656 = vsel %vm1648, %v1591, %v1091
        %v1658 = vsel %vm1648, %v1593, %v1093
        %v1660 = vsel %vm1648, %v1595, %v1095
        %v1662 = vsel %vm1648, %v1597, %v1097
        %v1664 = vsel %vm1648, %v1599, %v1099
        %v1666 = vsel %vm1648, %v1601, %v1101
        %v1668 = vsel %vm1648, %v1603, %v1103
        %v1670 = vsel %vm1648, %v1605, %v1105
        %v1672 = vsel %vm1648, %v1607, %v1107
        %v1674 = vsel %vm1648, %v1609, %v1109
        %v1676 = vsel %vm1648, %v1611, %v1111
        %v1678 = vsel %vm1648, %v1613, %v1113
        %v1680 = vsel %vm1648, %v1615, %v1115
        %v1682 = vsel %vm1648, %v1617, %v1117
        %v1684 = vsel %vm1648, %v1619, %v1119
        %v1686 = vsel %vm1648, %v1621, %v1121
        %v1688 = vsel %vm1648, %v1623, %v1123
        %v1690 = vsel %vm1648, %v1625, %v1125
        %v1692 = vsel %vm1648, %v1627, %v1127
        %v1694 = vsel %vm1648, %v1629, %v1129
        %v1696 = vsel %vm1648, %v1631, %v1131
        %v1698 = vsel %vm1648, %v1633, %v1133
        %v1700 = vsel %vm1648, %v1635, %v1135
        %v1702 = vsel %vm1648, %v1637, %v1137
        %v1704 = vsel %vm1648, %v1639, %v1139
        %v1706 = vsel %vm1648, %v1641, %v1141
        %v1708 = vsel %vm1648, %v1643, %v1143
        %v1710 = vsel %vm1648, %v1645, %v1145
        %v1712 = vsel %vm1648, %v1647, %v1147
        %vm1713 = vcmask 130048
        %v1715 = vsel %vm1713, %v1650, %v1151
        %v1717 = vsel %vm1713, %v1652, %v1153
        %v1719 = vsel %vm1713, %v1654, %v1155
        %v1721 = vsel %vm1713, %v1656, %v1157
        %v1723 = vsel %vm1713, %v1658, %v1159
        %v1725 = vsel %vm1713, %v1660, %v1161
        %v1727 = vsel %vm1713, %v1662, %v1163
        %v1729 = vsel %vm1713, %v1664, %v1165
        %v1731 = vsel %vm1713, %v1666, %v1167
        %v1733 = vsel %vm1713, %v1668, %v1169
        %v1735 = vsel %vm1713, %v1670, %v1171
        %v1737 = vsel %vm1713, %v1672, %v1173
        %v1739 = vsel %vm1713, %v1674, %v1175
        %v1741 = vsel %vm1713, %v1676, %v1177
        %v1743 = vsel %vm1713, %v1678, %v1179
        %v1745 = vsel %vm1713, %v1680, %v1181
        %v1747 = vsel %vm1713, %v1682, %v1183
        %v1749 = vsel %vm1713, %v1684, %v1185
        %v1751 = vsel %vm1713, %v1686, %v1187
        %v1753 = vsel %vm1713, %v1688, %v1189
        %v1755 = vsel %vm1713, %v1690, %v1191
        %v1757 = vsel %vm1713, %v1692, %v1193
        %v1759 = vsel %vm1713, %v1694, %v1195
        %v1761 = vsel %vm1713, %v1696, %v1197
        %v1763 = vsel %vm1713, %v1698, %v1199
        %v1765 = vsel %vm1713, %v1700, %v1201
        %v1767 = vsel %vm1713, %v1702, %v1203
        %v1769 = vsel %vm1713, %v1704, %v1205
        %v1771 = vsel %vm1713, %v1706, %v1207
        %v1773 = vsel %vm1713, %v1708, %v1209
        %v1775 = vsel %vm1713, %v1710, %v1211
        %v1777 = vsel %vm1713, %v1712, %v1213
        %vm1778 = vcmask 162816
        %v1780 = vsel %vm1778, %v1715, %v1217
        %v1782 = vsel %vm1778, %v1717, %v1219
        %v1784 = vsel %vm1778, %v1719, %v1221
        %v1786 = vsel %vm1778, %v1721, %v1223
        %v1788 = vsel %vm1778, %v1723, %v1225
        %v1790 = vsel %vm1778, %v1725, %v1227
        %v1792 = vsel %vm1778, %v1727, %v1229
        %v1794 = vsel %vm1778, %v1729, %v1231
        %v1796 = vsel %vm1778, %v1731, %v1233
        %v1798 = vsel %vm1778, %v1733, %v1235
        %v1800 = vsel %vm1778, %v1735, %v1237
        %v1802 = vsel %vm1778, %v1737, %v1239
        %v1804 = vsel %vm1778, %v1739, %v1241
        %v1806 = vsel %vm1778, %v1741, %v1243
        %v1808 = vsel %vm1778, %v1743, %v1245
        %v1810 = vsel %vm1778, %v1745, %v1247
        %v1812 = vsel %vm1778, %v1747, %v1249
        %v1814 = vsel %vm1778, %v1749, %v1251
        %v1816 = vsel %vm1778, %v1751, %v1253
        %v1818 = vsel %vm1778, %v1753, %v1255
        %v1820 = vsel %vm1778, %v1755, %v1257
        %v1822 = vsel %vm1778, %v1757, %v1259
        %v1824 = vsel %vm1778, %v1759, %v1261
        %v1826 = vsel %vm1778, %v1761, %v1263
        %v1828 = vsel %vm1778, %v1763, %v1265
        %v1830 = vsel %vm1778, %v1765, %v1267
        %v1832 = vsel %vm1778, %v1767, %v1269
        %v1834 = vsel %vm1778, %v1769, %v1271
        %v1836 = vsel %vm1778, %v1771, %v1273
        %v1838 = vsel %vm1778, %v1773, %v1275
        %v1840 = vsel %vm1778, %v1775, %v1277
        %v1842 = vsel %vm1778, %v1777, %v1279
        %vm1843 = vcmask 195584
        %v1845 = vsel %vm1843, %v1780, %v1291
        %v1847 = vsel %vm1843, %v1782, %v1293
        %v1849 = vsel %vm1843, %v1784, %v1295
        %v1851 = vsel %vm1843, %v1786, %v1297
        %v1853 = vsel %vm1843, %v1788, %v1299
        %v1855 = vsel %vm1843, %v1790, %v1301
        %v1857 = vsel %vm1843, %v1792, %v1303
        %v1859 = vsel %vm1843, %v1794, %v1305
        %v1861 = vsel %vm1843, %v1796, %v1307
        %v1863 = vsel %vm1843, %v1798, %v1309
        %v1865 = vsel %vm1843, %v1800, %v1311
        %v1867 = vsel %vm1843, %v1802, %v1313
        %v1869 = vsel %vm1843, %v1804, %v1315
        %v1871 = vsel %vm1843, %v1806, %v1317
        %v1873 = vsel %vm1843, %v1808, %v1319
        %v1875 = vsel %vm1843, %v1810, %v1321
        %v1877 = vsel %vm1843, %v1812, %v1323
        %v1879 = vsel %vm1843, %v1814, %v1325
        %v1881 = vsel %vm1843, %v1816, %v1327
        %v1883 = vsel %vm1843, %v1818, %v1329
        %v1885 = vsel %vm1843, %v1820, %v1331
        %v1887 = vsel %vm1843, %v1822, %v1333
        %v1889 = vsel %vm1843, %v1824, %v1335
        %v1891 = vsel %vm1843, %v1826, %v1337
        %v1893 = vsel %vm1843, %v1828, %v1339
        %v1895 = vsel %vm1843, %v1830, %v1341
        %v1897 = vsel %vm1843, %v1832, %v1343
        %v1899 = vsel %vm1843, %v1834, %v1345
        %v1901 = vsel %vm1843, %v1836, %v1347
        %v1903 = vsel %vm1843, %v1838, %v1349
        %v1905 = vsel %vm1843, %v1840, %v1351
        %v1907 = vsel %vm1843, %v1842, %v1353
        %vm1908 = vcmask 228352
        %v1910 = vsel %vm1908, %v1845, %v1357
        %v1912 = vsel %vm1908, %v1847, %v1359
        %v1914 = vsel %vm1908, %v1849, %v1361
        %v1916 = vsel %vm1908, %v1851, %v1363
        %v1918 = vsel %vm1908, %v1853, %v1365
        %v1920 = vsel %vm1908, %v1855, %v1367
        %v1922 = vsel %vm1908, %v1857, %v1369
        %v1924 = vsel %vm1908, %v1859, %v1371
        %v1926 = vsel %vm1908, %v1861, %v1373
        %v1928 = vsel %vm1908, %v1863, %v1375
        %v1930 = vsel %vm1908, %v1865, %v1377
        %v1932 = vsel %vm1908, %v1867, %v1379
        %v1934 = vsel %vm1908, %v1869, %v1381
        %v1936 = vsel %vm1908, %v1871, %v1383
        %v1938 = vsel %vm1908, %v1873, %v1385
        %v1940 = vsel %vm1908, %v1875, %v1387
        %v1942 = vsel %vm1908, %v1877, %v1389
        %v1944 = vsel %vm1908, %v1879, %v1391
        %v1946 = vsel %vm1908, %v1881, %v1393
        %v1948 = vsel %vm1908, %v1883, %v1395
        %v1950 = vsel %vm1908, %v1885, %v1397
        %v1952 = vsel %vm1908, %v1887, %v1399
        %v1954 = vsel %vm1908, %v1889, %v1401
        %v1956 = vsel %vm1908, %v1891, %v1403
        %v1958 = vsel %vm1908, %v1893, %v1405
        %v1960 = vsel %vm1908, %v1895, %v1407
        %v1962 = vsel %vm1908, %v1897, %v1409
        %v1964 = vsel %vm1908, %v1899, %v1411
        %v1966 = vsel %vm1908, %v1901, %v1413
        %v1968 = vsel %vm1908, %v1903, %v1415
        %v1970 = vsel %vm1908, %v1905, %v1417
        %v1972 = vsel %vm1908, %v1907, %v1419
        %vm1973 = vcmask 261120
        %v1975 = vsel %vm1973, %v1910, %v1423
        %v1977 = vsel %vm1973, %v1912, %v1425
        %v1979 = vsel %vm1973, %v1914, %v1427
        %v1981 = vsel %vm1973, %v1916, %v1429
        %v1983 = vsel %vm1973, %v1918, %v1431
        %v1985 = vsel %vm1973, %v1920, %v1433
        %v1987 = vsel %vm1973, %v1922, %v1435
        %v1989 = vsel %vm1973, %v1924, %v1437
        %v1991 = vsel %vm1973, %v1926, %v1439
        %v1993 = vsel %vm1973, %v1928, %v1441
        %v1995 = vsel %vm1973, %v1930, %v1443
        %v1997 = vsel %vm1973, %v1932, %v1445
        %v1999 = vsel %vm1973, %v1934, %v1447
        %v2001 = vsel %vm1973, %v1936, %v1449
        %v2003 = vsel %vm1973, %v1938, %v1451
        %v2005 = vsel %vm1973, %v1940, %v1453
        %v2007 = vsel %vm1973, %v1942, %v1455
        %v2009 = vsel %vm1973, %v1944, %v1457
        %v2011 = vsel %vm1973, %v1946, %v1459
        %v2013 = vsel %vm1973, %v1948, %v1461
        %v2015 = vsel %vm1973, %v1950, %v1463
        %v2017 = vsel %vm1973, %v1952, %v1465
        %v2019 = vsel %vm1973, %v1954, %v1467
        %v2021 = vsel %vm1973, %v1956, %v1469
        %v2023 = vsel %vm1973, %v1958, %v1471
        %v2025 = vsel %vm1973, %v1960, %v1473
        %v2027 = vsel %vm1973, %v1962, %v1475
        %v2029 = vsel %vm1973, %v1964, %v1477
        %v2031 = vsel %vm1973, %v1966, %v1479
        %v2033 = vsel %vm1973, %v1968, %v1481
        %v2035 = vsel %vm1973, %v1970, %v1483
        %v2037 = vsel %vm1973, %v1972, %v1485
        %v2038 = vld [vmem:[%s1] sm:$0xf]
        %v2039 = vld [vmem:[%s1 + $0x4] sm:$0xf]
        %v2040 = vld [vmem:[%s1 + $0x8] sm:$0xf]
        %v2041 = vld [vmem:[%s1 + $0xc] sm:$0xf]
        %v2042 = vld [vmem:[%s1 + $0x10] sm:$0x3]
        %v2048 = vunpack.c.l.b16 %v2038
        %v2049 = vunpack.c.l.b16 %v2039
        %v2050 = vunpack.c.l.b16 %v2040
        %v2051 = vunpack.c.l.b16 %v2041
        %v2052 = vunpack.c.l.b16 %v2042
        %v2053 = vpack.c.b16 %v2049, %v2048
        %v2054 = vpack.c.b16 %v2051, %v2050
        %v2055 = vpack.c.b16 %v2052, %v2052
        %vm2058 = vcmask 293888
        %v2059 = vsel %vm2058, %v1975, 0
        %v2061 = vsel %vm2058, %v1977, 0
        %v2063 = vsel %vm2058, %v1979, 0
        %v2065 = vsel %vm2058, %v1981, 0
        %v2067 = vsel %vm2058, %v1983, 0
        %v2069 = vsel %vm2058, %v1985, 0
        %v2071 = vsel %vm2058, %v1987, 0
        %v2073 = vsel %vm2058, %v1989, 0
        %v2075 = vsel %vm2058, %v1991, 0
        %v2077 = vsel %vm2058, %v1993, 0
        %v2079 = vsel %vm2058, %v1995, 0
        %v2081 = vsel %vm2058, %v1997, 0
        %v2083 = vsel %vm2058, %v1999, 0
        %v2085 = vsel %vm2058, %v2001, 0
        %v2087 = vsel %vm2058, %v2003, 0
        %v2089 = vsel %vm2058, %v2005, 0
        %v2091 = vsel %vm2058, %v2007, 0
        %v2093 = vsel %vm2058, %v2009, 0
        %v2095 = vsel %vm2058, %v2011, 0
        %v2097 = vsel %vm2058, %v2013, 0
        %v2099 = vsel %vm2058, %v2015, 0
        %v2101 = vsel %vm2058, %v2017, 0
        %v2103 = vsel %vm2058, %v2019, 0
        %v2105 = vsel %vm2058, %v2021, 0
        %v2107 = vsel %vm2058, %v2023, 0
        %v2109 = vsel %vm2058, %v2025, 0
        %v2111 = vsel %vm2058, %v2027, 0
        %v2113 = vsel %vm2058, %v2029, 0
        %v2115 = vsel %vm2058, %v2031, 0
        %v2117 = vsel %vm2058, %v2033, 0
        %v2119 = vsel %vm2058, %v2035, 0
        %v2121 = vsel %vm2058, %v2037, 0
        %vm2123 = vcmask 1041408
        %v2125 = vsel %vm2123, %v2055, 0
        %2127 = vmatprep.subr.bf16.mxu0 0
        %2128 = vmatpush1.bf16.msra.mxu0 0
        %2129 = vmatprep.subr.bf16.mxu0 0
        %2130 = vmatpush1.bf16.msra.mxu0 0
        %2131 = vmatprep.subr.bf16.mxu0 0
        %2132 = vmatpush1.bf16.msra.mxu0 0
        %2133 = vmatprep.subr.bf16.mxu0 0
        %2134 = vmatpush1.bf16.msra.mxu0 0
        %2135 = vmatprep.subr.bf16.mxu0 0
        %2136 = vmatpush1.bf16.msra.mxu0 0
        %2137 = vmatprep.subr.bf16.mxu0 0
        %2138 = vmatpush1.bf16.msra.mxu0 %v2125
        %2139 = vmatprep.subr.bf16.mxu0 0
        %2140 = vmatpush1.bf16.msra.mxu0 %v2054
        %2141 = vmatprep.subr.bf16.mxu0 0
        %2142 = vmatpush1.bf16.msra.mxu0 %v2053
        %2143 = vmatprep.subr.bf16.mxu0 0
        %2144 = vmatpush2.bf16.msra.mxu0 0
        %2145 = vmatprep.subr.bf16.mxu0 0
        %2146 = vmatpush2.bf16.msra.mxu0 0
        %2147 = vmatprep.subr.bf16.mxu0 0
        %2148 = vmatpush2.bf16.msra.mxu0 0
        %2149 = vmatprep.subr.bf16.mxu0 0
        %2150 = vmatpush2.bf16.msra.mxu0 0
        %2151 = vmatprep.subr.bf16.mxu0 0
        %2152 = vmatpush2.bf16.msra.mxu0 0
        %2153 = vmatprep.subr.bf16.mxu0 0
        %2154 = vmatpush2.bf16.msra.mxu0 0
        %2155 = vmatprep.subr.bf16.mxu0 0
        %2156 = vmatpush2.bf16.msra.mxu0 0
        %2157 = vmatprep.subr.bf16.mxu0 0
        %2158 = vmatpush2.bf16.msra.mxu0 0
        %2159 = vmatprep.mubr.bf16.mxu0 0
        %2160 = vmatmul.mubr.bf16.gmra.mxu0 %v2059
        %v2161 = vpop.f32.mrf.mxu0
        %v2162 = vadd.f32 0.0, %v2161
        %v2163 = vpop.f32.mrf.mxu0
        %v2164 = vpop.f32.mrf.mxu0
        %v2165 = vadd.f32 0.0, %v2164
        %v2166 = vpop.f32.mrf.mxu0
        %2167 = vmatprep.mubr.bf16.mxu0 0
        %2168 = vmatmul.mubr.bf16.gmra.mxu0 %v2061
        %v2169 = vpop.f32.mrf.mxu0
        %v2170 = vpop.f32.mrf.mxu0
        %v2171 = vpop.f32.mrf.mxu0
        %v2172 = vpop.f32.mrf.mxu0
        %2173 = vmatprep.mubr.bf16.mxu0 0
        %2174 = vmatmul.mubr.bf16.gmra.mxu0 %v2063
        %v2175 = vpop.f32.mrf.mxu0
        %v2176 = vadd.f32 0.0, %v2175
        %v2177 = vpop.f32.mrf.mxu0
        %v2178 = vpop.f32.mrf.mxu0
        %v2179 = vadd.f32 0.0, %v2178
        %v2180 = vpop.f32.mrf.mxu0
        %2181 = vmatprep.mubr.bf16.mxu0 0
        %2182 = vmatmul.mubr.bf16.gmra.mxu0 %v2065
        %v2183 = vpop.f32.mrf.mxu0
        %v2184 = vpop.f32.mrf.mxu0
        %v2185 = vpop.f32.mrf.mxu0
        %v2186 = vpop.f32.mrf.mxu0
        %2187 = vmatprep.mubr.bf16.mxu0 0
        %2188 = vmatmul.mubr.bf16.gmra.mxu0 %v2067
        %v2189 = vpop.f32.mrf.mxu0
        %v2190 = vadd.f32 0.0, %v2189
        %v2191 = vpop.f32.mrf.mxu0
        %v2192 = vpop.f32.mrf.mxu0
        %v2193 = vadd.f32 0.0, %v2192
        %v2194 = vpop.f32.mrf.mxu0
        %2195 = vmatprep.mubr.bf16.mxu0 0
        %2196 = vmatmul.mubr.bf16.gmra.mxu0 %v2069
        %v2197 = vpop.f32.mrf.mxu0
        %v2198 = vpop.f32.mrf.mxu0
        %v2199 = vpop.f32.mrf.mxu0
        %v2200 = vpop.f32.mrf.mxu0
        %2201 = vmatprep.mubr.bf16.mxu0 0
        %2202 = vmatmul.mubr.bf16.gmra.mxu0 %v2071
        %v2203 = vpop.f32.mrf.mxu0
        %v2204 = vadd.f32 0.0, %v2203
        %v2205 = vpop.f32.mrf.mxu0
        %v2206 = vpop.f32.mrf.mxu0
        %v2207 = vadd.f32 0.0, %v2206
        %v2208 = vpop.f32.mrf.mxu0
        %2209 = vmatprep.mubr.bf16.mxu0 0
        %2210 = vmatmul.mubr.bf16.gmra.mxu0 %v2073
        %v2211 = vpop.f32.mrf.mxu0
        %v2212 = vpop.f32.mrf.mxu0
        %v2213 = vpop.f32.mrf.mxu0
        %v2214 = vpop.f32.mrf.mxu0
        %2215 = vmatprep.mubr.bf16.mxu0 0
        %2216 = vmatmul.mubr.bf16.gmra.mxu0 %v2075
        %v2217 = vpop.f32.mrf.mxu0
        %v2218 = vadd.f32 0.0, %v2217
        %v2219 = vpop.f32.mrf.mxu0
        %v2220 = vpop.f32.mrf.mxu0
        %v2221 = vadd.f32 0.0, %v2220
        %v2222 = vpop.f32.mrf.mxu0
        %2223 = vmatprep.mubr.bf16.mxu0 0
        %2224 = vmatmul.mubr.bf16.gmra.mxu0 %v2077
        %v2225 = vpop.f32.mrf.mxu0
        %v2226 = vpop.f32.mrf.mxu0
        %v2227 = vpop.f32.mrf.mxu0
        %v2228 = vpop.f32.mrf.mxu0
        %2229 = vmatprep.mubr.bf16.mxu0 0
        %2230 = vmatmul.mubr.bf16.gmra.mxu0 %v2079
        %v2231 = vpop.f32.mrf.mxu0
        %v2232 = vadd.f32 0.0, %v2231
        %v2233 = vpop.f32.mrf.mxu0
        %v2234 = vpop.f32.mrf.mxu0
        %v2235 = vadd.f32 0.0, %v2234
        %v2236 = vpop.f32.mrf.mxu0
        %2237 = vmatprep.mubr.bf16.mxu0 0
        %2238 = vmatmul.mubr.bf16.gmra.mxu0 %v2081
        %v2239 = vpop.f32.mrf.mxu0
        %v2240 = vpop.f32.mrf.mxu0
        %v2241 = vpop.f32.mrf.mxu0
        %v2242 = vpop.f32.mrf.mxu0
        %2243 = vmatprep.mubr.bf16.mxu0 0
        %2244 = vmatmul.mubr.bf16.gmra.mxu0 %v2083
        %v2245 = vpop.f32.mrf.mxu0
        %v2246 = vadd.f32 0.0, %v2245
        %v2247 = vpop.f32.mrf.mxu0
        %v2248 = vpop.f32.mrf.mxu0
        %v2249 = vadd.f32 0.0, %v2248
        %v2250 = vpop.f32.mrf.mxu0
        %2251 = vmatprep.mubr.bf16.mxu0 0
        %2252 = vmatmul.mubr.bf16.gmra.mxu0 %v2085
        %v2253 = vpop.f32.mrf.mxu0
        %v2254 = vpop.f32.mrf.mxu0
        %v2255 = vpop.f32.mrf.mxu0
        %v2256 = vpop.f32.mrf.mxu0
        %2257 = vmatprep.mubr.bf16.mxu0 0
        %2258 = vmatmul.mubr.bf16.gmra.mxu0 %v2087
        %v2259 = vpop.f32.mrf.mxu0
        %v2260 = vadd.f32 0.0, %v2259
        %v2261 = vpop.f32.mrf.mxu0
        %v2262 = vpop.f32.mrf.mxu0
        %v2263 = vadd.f32 0.0, %v2262
        %v2264 = vpop.f32.mrf.mxu0
        %2265 = vmatprep.mubr.bf16.mxu0 0
        %2266 = vmatmul.mubr.bf16.gmra.mxu0 %v2089
        %v2267 = vpop.f32.mrf.mxu0
        %v2268 = vpop.f32.mrf.mxu0
        %v2269 = vpop.f32.mrf.mxu0
        %v2270 = vpop.f32.mrf.mxu0
        %2271 = vmatprep.mubr.bf16.mxu0 0
        %2272 = vmatmul.mubr.bf16.gmra.mxu0 %v2091
        %v2273 = vpop.f32.mrf.mxu0
        %v2274 = vadd.f32 0.0, %v2273
        %v2275 = vpop.f32.mrf.mxu0
        %v2276 = vpop.f32.mrf.mxu0
        %v2277 = vadd.f32 0.0, %v2276
        %v2278 = vpop.f32.mrf.mxu0
        %2279 = vmatprep.mubr.bf16.mxu0 0
        %2280 = vmatmul.mubr.bf16.gmra.mxu0 %v2093
        %v2281 = vpop.f32.mrf.mxu0
        %v2282 = vpop.f32.mrf.mxu0
        %v2283 = vpop.f32.mrf.mxu0
        %v2284 = vpop.f32.mrf.mxu0
        %2285 = vmatprep.mubr.bf16.mxu0 0
        %2286 = vmatmul.mubr.bf16.gmra.mxu0 %v2095
        %v2287 = vpop.f32.mrf.mxu0
        %v2288 = vadd.f32 0.0, %v2287
        %v2289 = vpop.f32.mrf.mxu0
        %v2290 = vpop.f32.mrf.mxu0
        %v2291 = vadd.f32 0.0, %v2290
        %v2292 = vpop.f32.mrf.mxu0
        %2293 = vmatprep.mubr.bf16.mxu0 0
        %2294 = vmatmul.mubr.bf16.gmra.mxu0 %v2097
        %v2295 = vpop.f32.mrf.mxu0
        %v2296 = vpop.f32.mrf.mxu0
        %v2297 = vpop.f32.mrf.mxu0
        %v2298 = vpop.f32.mrf.mxu0
        %2299 = vmatprep.mubr.bf16.mxu0 0
        %2300 = vmatmul.mubr.bf16.gmra.mxu0 %v2099
        %v2301 = vpop.f32.mrf.mxu0
        %v2302 = vadd.f32 0.0, %v2301
        %v2303 = vpop.f32.mrf.mxu0
        %v2304 = vpop.f32.mrf.mxu0
        %v2305 = vadd.f32 0.0, %v2304
        %v2306 = vpop.f32.mrf.mxu0
        %2307 = vmatprep.mubr.bf16.mxu0 0
        %2308 = vmatmul.mubr.bf16.gmra.mxu0 %v2101
        %v2309 = vpop.f32.mrf.mxu0
        %v2310 = vpop.f32.mrf.mxu0
        %v2311 = vpop.f32.mrf.mxu0
        %v2312 = vpop.f32.mrf.mxu0
        %2313 = vmatprep.mubr.bf16.mxu0 0
        %2314 = vmatmul.mubr.bf16.gmra.mxu0 %v2103
        %v2315 = vpop.f32.mrf.mxu0
        %v2316 = vadd.f32 0.0, %v2315
        %v2317 = vpop.f32.mrf.mxu0
        %v2318 = vpop.f32.mrf.mxu0
        %v2319 = vadd.f32 0.0, %v2318
        %v2320 = vpop.f32.mrf.mxu0
        %2321 = vmatprep.mubr.bf16.mxu0 0
        %2322 = vmatmul.mubr.bf16.gmra.mxu0 %v2105
        %v2323 = vpop.f32.mrf.mxu0
        %v2324 = vpop.f32.mrf.mxu0
        %v2325 = vpop.f32.mrf.mxu0
        %v2326 = vpop.f32.mrf.mxu0
        %2327 = vmatprep.mubr.bf16.mxu0 0
        %2328 = vmatmul.mubr.bf16.gmra.mxu0 %v2107
        %v2329 = vpop.f32.mrf.mxu0
        %v2330 = vadd.f32 0.0, %v2329
        %v2331 = vpop.f32.mrf.mxu0
        %v2332 = vpop.f32.mrf.mxu0
        %v2333 = vadd.f32 0.0, %v2332
        %v2334 = vpop.f32.mrf.mxu0
        %2335 = vmatprep.mubr.bf16.mxu0 0
        %2336 = vmatmul.mubr.bf16.gmra.mxu0 %v2109
        %v2337 = vpop.f32.mrf.mxu0
        %v2338 = vpop.f32.mrf.mxu0
        %v2339 = vpop.f32.mrf.mxu0
        %v2340 = vpop.f32.mrf.mxu0
        %2341 = vmatprep.mubr.bf16.mxu0 0
        %2342 = vmatmul.mubr.bf16.gmra.mxu0 %v2111
        %v2343 = vpop.f32.mrf.mxu0
        %v2344 = vadd.f32 0.0, %v2343
        %v2345 = vpop.f32.mrf.mxu0
        %v2346 = vpop.f32.mrf.mxu0
        %v2347 = vadd.f32 0.0, %v2346
        %v2348 = vpop.f32.mrf.mxu0
        %2349 = vmatprep.mubr.bf16.mxu0 0
        %2350 = vmatmul.mubr.bf16.gmra.mxu0 %v2113
        %v2351 = vpop.f32.mrf.mxu0
        %v2352 = vpop.f32.mrf.mxu0
        %v2353 = vpop.f32.mrf.mxu0
        %v2354 = vpop.f32.mrf.mxu0
        %2355 = vmatprep.mubr.bf16.mxu0 0
        %2356 = vmatmul.mubr.bf16.gmra.mxu0 %v2115
        %v2357 = vpop.f32.mrf.mxu0
        %v2358 = vadd.f32 0.0, %v2357
        %v2359 = vpop.f32.mrf.mxu0
        %v2360 = vpop.f32.mrf.mxu0
        %v2361 = vadd.f32 0.0, %v2360
        %v2362 = vpop.f32.mrf.mxu0
        %2363 = vmatprep.mubr.bf16.mxu0 0
        %2364 = vmatmul.mubr.bf16.gmra.mxu0 %v2117
        %v2365 = vpop.f32.mrf.mxu0
        %v2366 = vpop.f32.mrf.mxu0
        %v2367 = vpop.f32.mrf.mxu0
        %v2368 = vpop.f32.mrf.mxu0
        %2369 = vmatprep.mubr.bf16.mxu0 0
        %2370 = vmatmul.mubr.bf16.gmra.mxu0 %v2119
        %v2371 = vpop.f32.mrf.mxu0
        %v2372 = vadd.f32 0.0, %v2371
        %v2373 = vpop.f32.mrf.mxu0
        %v2374 = vpop.f32.mrf.mxu0
        %v2375 = vadd.f32 0.0, %v2374
        %v2376 = vpop.f32.mrf.mxu0
        %2377 = vmatprep.mubr.bf16.mxu0 0
        %2378 = vmatmul.mubr.bf16.gmra.mxu0 %v2121
        %v2379 = vpop.f32.mrf.mxu0
        %v2380 = vpop.f32.mrf.mxu0
        %v2381 = vpop.f32.mrf.mxu0
        %v2382 = vpop.f32.mrf.mxu0
        %2383 = vdwg.mxu0
        %v2384 = vpack.c.bf16 %v2165, %v2162
        %v2385 = vpack.c.bf16 %v2179, %v2176
        %v2386 = vpack.c.bf16 %v2193, %v2190
        %v2387 = vpack.c.bf16 %v2207, %v2204
        %v2388 = vpack.c.bf16 %v2221, %v2218
        %v2389 = vpack.c.bf16 %v2235, %v2232
        %v2390 = vpack.c.bf16 %v2249, %v2246
        %v2391 = vpack.c.bf16 %v2263, %v2260
        %v2392 = vpack.c.bf16 %v2277, %v2274
        %v2393 = vpack.c.bf16 %v2291, %v2288
        %v2394 = vpack.c.bf16 %v2305, %v2302
        %v2395 = vpack.c.bf16 %v2319, %v2316
        %v2396 = vpack.c.bf16 %v2333, %v2330
        %v2397 = vpack.c.bf16 %v2347, %v2344
        %v2398 = vpack.c.bf16 %v2361, %v2358
        %v2399 = vpack.c.bf16 %v2375, %v2372
        %v2416 = vunpack.c.l.b16 %v2384
        %v2417 = vunpack.c.h.b16 %v2384
        %v2418 = vunpack.c.l.b16 %v2385
        %v2419 = vunpack.c.h.b16 %v2385
        %v2420 = vunpack.c.l.b16 %v2386
        %v2421 = vunpack.c.h.b16 %v2386
        %v2422 = vunpack.c.l.b16 %v2387
        %v2423 = vunpack.c.h.b16 %v2387
        %v2424 = vunpack.c.l.b16 %v2388
        %v2425 = vunpack.c.h.b16 %v2388
        %v2426 = vunpack.c.l.b16 %v2389
        %v2427 = vunpack.c.h.b16 %v2389
        %v2428 = vunpack.c.l.b16 %v2390
        %v2429 = vunpack.c.h.b16 %v2390
        %v2430 = vunpack.c.l.b16 %v2391
        %v2431 = vunpack.c.h.b16 %v2391
        %v2432 = vunpack.c.l.b16 %v2392
        %v2433 = vunpack.c.h.b16 %v2392
        %v2434 = vunpack.c.l.b16 %v2393
        %v2435 = vunpack.c.h.b16 %v2393
        %v2436 = vunpack.c.l.b16 %v2394
        %v2437 = vunpack.c.h.b16 %v2394
        %v2438 = vunpack.c.l.b16 %v2395
        %v2439 = vunpack.c.h.b16 %v2395
        %v2440 = vunpack.c.l.b16 %v2396
        %v2441 = vunpack.c.h.b16 %v2396
        %v2442 = vunpack.c.l.b16 %v2397
        %v2443 = vunpack.c.h.b16 %v2397
        %v2444 = vunpack.c.l.b16 %v2398
        %v2445 = vunpack.c.h.b16 %v2398
        %v2446 = vunpack.c.l.b16 %v2399
        %v2447 = vunpack.c.h.b16 %v2399
        %v2448 = vpack.c.b16 %v2416, %v2416
        %v2449 = vpack.c.b16 %v2417, %v2417
        %v2450 = vpack.c.b16 %v2418, %v2418
        %v2451 = vpack.c.b16 %v2419, %v2419
        %v2452 = vpack.c.b16 %v2420, %v2420
        %v2453 = vpack.c.b16 %v2421, %v2421
        %v2454 = vpack.c.b16 %v2422, %v2422
        %v2455 = vpack.c.b16 %v2423, %v2423
        %v2456 = vpack.c.b16 %v2424, %v2424
        %v2457 = vpack.c.b16 %v2425, %v2425
        %v2458 = vpack.c.b16 %v2426, %v2426
        %v2459 = vpack.c.b16 %v2427, %v2427
        %v2460 = vpack.c.b16 %v2428, %v2428
        %v2461 = vpack.c.b16 %v2429, %v2429
        %v2462 = vpack.c.b16 %v2430, %v2430
        %v2463 = vpack.c.b16 %v2431, %v2431
        %v2464 = vpack.c.b16 %v2432, %v2432
        %v2465 = vpack.c.b16 %v2433, %v2433
        %v2466 = vpack.c.b16 %v2434, %v2434
        %v2467 = vpack.c.b16 %v2435, %v2435
        %v2468 = vpack.c.b16 %v2436, %v2436
        %v2469 = vpack.c.b16 %v2437, %v2437
        %v2470 = vpack.c.b16 %v2438, %v2438
        %v2471 = vpack.c.b16 %v2439, %v2439
        %v2472 = vpack.c.b16 %v2440, %v2440
        %v2473 = vpack.c.b16 %v2441, %v2441
        %v2474 = vpack.c.b16 %v2442, %v2442
        %v2475 = vpack.c.b16 %v2443, %v2443
        %v2476 = vpack.c.b16 %v2444, %v2444
        %v2477 = vpack.c.b16 %v2445, %v2445
        %v2478 = vpack.c.b16 %v2446, %v2446
        %v2479 = vpack.c.b16 %v2447, %v2447
        %vm2512 = vcmask 60416
        %2513 = vst.msk [vmem:[%s207] sm:$0xf] %vm2512, %v2448
        %2514 = vst.msk [vmem:[%s207 + $0x4] sm:$0xf] %vm2512, %v2449
        %2515 = vst.msk [vmem:[%s207 + $0x8] sm:$0xf] %vm2512, %v2450
        %2516 = vst.msk [vmem:[%s207 + $0xc] sm:$0xf] %vm2512, %v2451
        %2517 = vst.msk [vmem:[%s207 + $0x10] sm:$0xf] %vm2512, %v2452
        %2518 = vst.msk [vmem:[%s207 + $0x14] sm:$0xf] %vm2512, %v2453
        %2519 = vst.msk [vmem:[%s207 + $0x18] sm:$0xf] %vm2512, %v2454
        %2520 = vst.msk [vmem:[%s207 + $0x1c] sm:$0xf] %vm2512, %v2455
        %2521 = vst.msk [vmem:[%s207 + $0x20] sm:$0xf] %vm2512, %v2456
        %2522 = vst.msk [vmem:[%s207 + $0x24] sm:$0xf] %vm2512, %v2457
        %2523 = vst.msk [vmem:[%s207 + $0x28] sm:$0xf] %vm2512, %v2458
        %2524 = vst.msk [vmem:[%s207 + $0x2c] sm:$0xf] %vm2512, %v2459
        %2525 = vst.msk [vmem:[%s207 + $0x30] sm:$0xf] %vm2512, %v2460
        %2526 = vst.msk [vmem:[%s207 + $0x34] sm:$0xf] %vm2512, %v2461
        %2527 = vst.msk [vmem:[%s207 + $0x38] sm:$0xf] %vm2512, %v2462
        %2528 = vst.msk [vmem:[%s207 + $0x3c] sm:$0xf] %vm2512, %v2463
        %2529 = vst.msk [vmem:[%s207 + $0x40] sm:$0xf] %vm2512, %v2464
        %2530 = vst.msk [vmem:[%s207 + $0x44] sm:$0xf] %vm2512, %v2465
        %2531 = vst.msk [vmem:[%s207 + $0x48] sm:$0xf] %vm2512, %v2466
        %2532 = vst.msk [vmem:[%s207 + $0x4c] sm:$0xf] %vm2512, %v2467
        %2533 = vst.msk [vmem:[%s207 + $0x50] sm:$0xf] %vm2512, %v2468
        %2534 = vst.msk [vmem:[%s207 + $0x54] sm:$0xf] %vm2512, %v2469
        %2535 = vst.msk [vmem:[%s207 + $0x58] sm:$0xf] %vm2512, %v2470
        %2536 = vst.msk [vmem:[%s207 + $0x5c] sm:$0xf] %vm2512, %v2471
        %2537 = vst.msk [vmem:[%s207 + $0x60] sm:$0xf] %vm2512, %v2472
        %2538 = vst.msk [vmem:[%s207 + $0x64] sm:$0xf] %vm2512, %v2473
        %2539 = vst.msk [vmem:[%s207 + $0x68] sm:$0xf] %vm2512, %v2474
        %2540 = vst.msk [vmem:[%s207 + $0x6c] sm:$0xf] %vm2512, %v2475
        %2541 = vst.msk [vmem:[%s207 + $0x70] sm:$0xf] %vm2512, %v2476
        %2542 = vst.msk [vmem:[%s207 + $0x74] sm:$0xf] %vm2512, %v2477
        %2543 = vst.msk [vmem:[%s207 + $0x78] sm:$0xf] %vm2512, %v2478
        %2544 = vst.msk [vmem:[%s207 + $0x7c] sm:$0xf] %vm2512, %v2479
        %v2545 = vsel %vm1583, %v2162, 0.0
        %v2546 = vsel %vm1583, %v2165, 0.0
        %v2547 = vadd.f32 %v2545, %v2546
        %v2548 = vsel %vm1583, %v2176, 0.0
        %v2549 = vadd.f32 %v2547, %v2548
        %v2550 = vsel %vm1583, %v2179, 0.0
        %v2551 = vadd.f32 %v2549, %v2550
        %v2552 = vsel %vm1583, %v2190, 0.0
        %v2553 = vadd.f32 %v2551, %v2552
        %v2554 = vsel %vm1583, %v2193, 0.0
        %v2555 = vadd.f32 %v2553, %v2554
        %v2556 = vsel %vm1583, %v2204, 0.0
        %v2557 = vadd.f32 %v2555, %v2556
        %v2558 = vsel %vm1583, %v2207, 0.0
        %v2559 = vadd.f32 %v2557, %v2558
        %v2560 = vsel %vm1583, %v2218, 0.0
        %v2561 = vadd.f32 %v2559, %v2560
        %v2562 = vsel %vm1583, %v2221, 0.0
        %v2563 = vadd.f32 %v2561, %v2562
        %v2564 = vsel %vm1583, %v2232, 0.0
        %v2565 = vadd.f32 %v2563, %v2564
        %v2566 = vsel %vm1583, %v2235, 0.0
        %v2567 = vadd.f32 %v2565, %v2566
        %v2568 = vsel %vm1583, %v2246, 0.0
        %v2569 = vadd.f32 %v2567, %v2568
        %v2570 = vsel %vm1583, %v2249, 0.0
        %v2571 = vadd.f32 %v2569, %v2570
        %v2572 = vsel %vm1583, %v2260, 0.0
        %v2573 = vadd.f32 %v2571, %v2572
        %v2574 = vsel %vm1583, %v2263, 0.0
        %v2575 = vadd.f32 %v2573, %v2574
        %v2576 = vsel %vm1583, %v2274, 0.0
        %v2577 = vadd.f32 %v2575, %v2576
        %v2578 = vsel %vm1583, %v2277, 0.0
        %v2579 = vadd.f32 %v2577, %v2578
        %v2580 = vsel %vm1583, %v2288, 0.0
        %v2581 = vadd.f32 %v2579, %v2580
        %v2582 = vsel %vm1583, %v2291, 0.0
        %v2583 = vadd.f32 %v2581, %v2582
        %v2584 = vsel %vm1583, %v2302, 0.0
        %v2585 = vadd.f32 %v2583, %v2584
        %v2586 = vsel %vm1583, %v2305, 0.0
        %v2587 = vadd.f32 %v2585, %v2586
        %v2588 = vsel %vm1583, %v2316, 0.0
        %v2589 = vadd.f32 %v2587, %v2588
        %v2590 = vsel %vm1583, %v2319, 0.0
        %v2591 = vadd.f32 %v2589, %v2590
        %v2592 = vsel %vm1583, %v2330, 0.0
        %v2593 = vadd.f32 %v2591, %v2592
        %v2594 = vsel %vm1583, %v2333, 0.0
        %v2595 = vadd.f32 %v2593, %v2594
        %v2596 = vsel %vm1583, %v2344, 0.0
        %v2597 = vadd.f32 %v2595, %v2596
        %v2598 = vsel %vm1583, %v2347, 0.0
        %v2599 = vadd.f32 %v2597, %v2598
        %v2600 = vsel %vm1583, %v2358, 0.0
        %v2601 = vadd.f32 %v2599, %v2600
        %v2602 = vsel %vm1583, %v2361, 0.0
        %v2603 = vadd.f32 %v2601, %v2602
        %v2604 = vsel %vm1583, %v2372, 0.0
        %v2605 = vadd.f32 %v2603, %v2604
        %v2606 = vsel %vm1583, %v2375, 0.0
        %v2607 = vadd.f32 %v2605, %v2606
        %v2608 = vrot.slane %v2607, 4
        %v2609 = vadd.f32 %v2607, %v2608
        %v2610 = vrot.slane %v2609, 2
        %v2611 = vadd.f32 %v2609, %v2610
        %v2612 = vrot.slane %v2611, 1
        %v2613 = vadd.f32 %v2611, %v2612
        %v2614 = vmul.f32 %v2162, %v2162
        %v2615 = vmul.f32 %v2165, %v2165
        %v2616 = vmul.f32 %v2176, %v2176
        %v2617 = vmul.f32 %v2179, %v2179
        %v2618 = vmul.f32 %v2190, %v2190
        %v2619 = vmul.f32 %v2193, %v2193
        %v2620 = vmul.f32 %v2204, %v2204
        %v2621 = vmul.f32 %v2207, %v2207
        %v2622 = vmul.f32 %v2218, %v2218
        %v2623 = vmul.f32 %v2221, %v2221
        %v2624 = vmul.f32 %v2232, %v2232
        %v2625 = vmul.f32 %v2235, %v2235
        %v2626 = vmul.f32 %v2246, %v2246
        %v2627 = vmul.f32 %v2249, %v2249
        %v2628 = vmul.f32 %v2260, %v2260
        %v2629 = vmul.f32 %v2263, %v2263
        %v2630 = vmul.f32 %v2274, %v2274
        %v2631 = vmul.f32 %v2277, %v2277
        %v2632 = vmul.f32 %v2288, %v2288
        %v2633 = vmul.f32 %v2291, %v2291
        %v2634 = vmul.f32 %v2302, %v2302
        %v2635 = vmul.f32 %v2305, %v2305
        %v2636 = vmul.f32 %v2316, %v2316
        %v2637 = vmul.f32 %v2319, %v2319
        %v2638 = vmul.f32 %v2330, %v2330
        %v2639 = vmul.f32 %v2333, %v2333
        %v2640 = vmul.f32 %v2344, %v2344
        %v2641 = vmul.f32 %v2347, %v2347
        %v2642 = vmul.f32 %v2358, %v2358
        %v2643 = vmul.f32 %v2361, %v2361
        %v2644 = vmul.f32 %v2372, %v2372
        %v2645 = vmul.f32 %v2375, %v2375
        %v2646 = vsel %vm1583, %v2614, 0.0
        %v2647 = vsel %vm1583, %v2615, 0.0
        %v2648 = vadd.f32 %v2646, %v2647
        %v2649 = vsel %vm1583, %v2616, 0.0
        %v2650 = vadd.f32 %v2648, %v2649
        %v2651 = vsel %vm1583, %v2617, 0.0
        %v2652 = vadd.f32 %v2650, %v2651
        %v2653 = vsel %vm1583, %v2618, 0.0
        %v2654 = vadd.f32 %v2652, %v2653
        %v2655 = vsel %vm1583, %v2619, 0.0
        %v2656 = vadd.f32 %v2654, %v2655
        %v2657 = vsel %vm1583, %v2620, 0.0
        %v2658 = vadd.f32 %v2656, %v2657
        %v2659 = vsel %vm1583, %v2621, 0.0
        %v2660 = vadd.f32 %v2658, %v2659
        %v2661 = vsel %vm1583, %v2622, 0.0
        %v2662 = vadd.f32 %v2660, %v2661
        %v2663 = vsel %vm1583, %v2623, 0.0
        %v2664 = vadd.f32 %v2662, %v2663
        %v2665 = vsel %vm1583, %v2624, 0.0
        %v2666 = vadd.f32 %v2664, %v2665
        %v2667 = vsel %vm1583, %v2625, 0.0
        %v2668 = vadd.f32 %v2666, %v2667
        %v2669 = vsel %vm1583, %v2626, 0.0
        %v2670 = vadd.f32 %v2668, %v2669
        %v2671 = vsel %vm1583, %v2627, 0.0
        %v2672 = vadd.f32 %v2670, %v2671
        %v2673 = vsel %vm1583, %v2628, 0.0
        %v2674 = vadd.f32 %v2672, %v2673
        %v2675 = vsel %vm1583, %v2629, 0.0
        %v2676 = vadd.f32 %v2674, %v2675
        %v2677 = vsel %vm1583, %v2630, 0.0
        %v2678 = vadd.f32 %v2676, %v2677
        %v2679 = vsel %vm1583, %v2631, 0.0
        %v2680 = vadd.f32 %v2678, %v2679
        %v2681 = vsel %vm1583, %v2632, 0.0
        %v2682 = vadd.f32 %v2680, %v2681
        %v2683 = vsel %vm1583, %v2633, 0.0
        %v2684 = vadd.f32 %v2682, %v2683
        %v2685 = vsel %vm1583, %v2634, 0.0
        %v2686 = vadd.f32 %v2684, %v2685
        %v2687 = vsel %vm1583, %v2635, 0.0
        %v2688 = vadd.f32 %v2686, %v2687
        %v2689 = vsel %vm1583, %v2636, 0.0
        %v2690 = vadd.f32 %v2688, %v2689
        %v2691 = vsel %vm1583, %v2637, 0.0
        %v2692 = vadd.f32 %v2690, %v2691
        %v2693 = vsel %vm1583, %v2638, 0.0
        %v2694 = vadd.f32 %v2692, %v2693
        %v2695 = vsel %vm1583, %v2639, 0.0
        %v2696 = vadd.f32 %v2694, %v2695
        %v2697 = vsel %vm1583, %v2640, 0.0
        %v2698 = vadd.f32 %v2696, %v2697
        %v2699 = vsel %vm1583, %v2641, 0.0
        %v2700 = vadd.f32 %v2698, %v2699
        %v2701 = vsel %vm1583, %v2642, 0.0
        %v2702 = vadd.f32 %v2700, %v2701
        %v2703 = vsel %vm1583, %v2643, 0.0
        %v2704 = vadd.f32 %v2702, %v2703
        %v2705 = vsel %vm1583, %v2644, 0.0
        %v2706 = vadd.f32 %v2704, %v2705
        %v2707 = vsel %vm1583, %v2645, 0.0
        %v2708 = vadd.f32 %v2706, %v2707
        %v2709 = vrot.slane %v2708, 4
        %v2710 = vadd.f32 %v2708, %v2709
        %v2711 = vrot.slane %v2710, 2
        %v2712 = vadd.f32 %v2710, %v2711
        %v2713 = vrot.slane %v2712, 1
        %v2714 = vadd.f32 %v2712, %v2713
        %vm2715 = vcmask 1040384
        %v2716 = vsel %vm2715, %v2613, %v2714
        %vm2717 = vcmask 58368
        %2718 = vst.msk [vmem:[%s192] sm:$0x3] %vm2717, %v2716
        %s2719 = smul.u32 16, %s23
        %p2720 = scmp.lt.s32.totalorder %s22, 1
        %s2721 = scalar_select %p2720, %s22, 1
        %p2722 = scmp.lt.s32.totalorder %s2719, 15
        %s2723 = scalar_select %p2722, %s2719, 15
        %s2724 = smul.addr %s2723, 2
        %s2725 = smul.addr %s2721, 32
        %s2726 = sadd.s32 %s2724, %s2725
        %s2727 = smul.addr %s2726, 4
        %s2728 = scalar_lea.vmem %s2, %s2727
        %s2729 = sand.u32 %s115, 1
        %s2730 = scalar_lea.sflag [#allocation3], %s2729
        %s2731 = sand.u32 %s115, 1
        %s2732 = smul.addr %s2731, 2
        %s2733 = scalar_lea.vmem [#allocation2], %s2732
        // Predicated region
        $region29: #{tpu_custom_call.1} parent=27 // pred_check
          %p2734 = pneg %p97
        $region30: #{tpu_custom_call.1} parent=27 // pred_check_branch
          %2736 = sbr.rel (%p2734) target = $region32
        $region31: #{tpu_custom_call.1} parent=27 // pred_region
          %s2737 = smul.u32 16, %s23
        $region32: #{tpu_custom_call.1} parent=27 // pred_fallthru
          _
        // Predicated region
        $region33: #{tpu_custom_call.1} parent=27 // pred_check
          %p2738 = pneg %p125
        $region34: #{tpu_custom_call.1} parent=27 // pred_check_branch
          %2740 = sbr.rel (%p2738) target = $region36
        $region35: #{tpu_custom_call.1} parent=27 // pred_region
          %s2742 = ssub.s32 32, 32
          %2743 = vsyncadd %s2730, %s2742
          %s2744 = sadd.s32 %s23, %s22
          %s2745 = smul.addr %s2744, 32
          %s2746 = scalar_lea.hbm %s3, %s2745
          %s2748 = sshll.u32 %s2733, 4
          %s2749 = int_to_ptr.vmem [resolvable:$true] %s2748
          %2751 = dma.vmem_to_hbm [thread:$0]  %s2749, 32, %s2746, %s2730
        $region36: #{tpu_custom_call.1} parent=27 // pred_fallthru
          _
      $region28: #{tpu_custom_call.1} parent=5 // pred_fallthru
        _
      %p2752 = scmp.le.s32.totalorder 2, %s13
      // Predicated region
      $region37: #{tpu_custom_call.1} parent=5 // pred_check
        %p2753 = pneg %p2752
      $region38: #{tpu_custom_call.1} parent=5 // pred_check_branch
        %2755 = sbr.rel (%p2753) target = $region40
      $region39: #{tpu_custom_call.1} parent=5 // pred_region
        %s2756 = ssub.s32 %s13, 2
        // Predicated region
        $region41: #{tpu_custom_call.1} parent=39 // pred_check
          %p2757 = pneg %p103
        $region42: #{tpu_custom_call.1} parent=39 // pred_check_branch
          %2759 = sbr.rel (%p2757) target = $region44
        $region43: #{tpu_custom_call.1} parent=39 // pred_region
          %s2760 = smul.u32 16, %s25
          %p2761 = scmp.lt.s32.totalorder %s24, 1
          %s2762 = scalar_select %p2761, %s24, 1
          %p2763 = scmp.lt.s32.totalorder %s2760, 15
          %s2764 = scalar_select %p2763, %s2760, 15
          %s2765 = smul.addr %s2764, 2
          %s2766 = smul.addr %s2762, 32
          %s2767 = sadd.s32 %s2765, %s2766
          %s2768 = smul.addr %s2767, 4
          %s2769 = scalar_lea.vmem %s2, %s2768
        $region44: #{tpu_custom_call.1} parent=39 // pred_fallthru
          _
        // Predicated region
        $region45: #{tpu_custom_call.1} parent=39 // pred_check
          %p2770 = pneg %p131
        $region46: #{tpu_custom_call.1} parent=39 // pred_check_branch
          %2772 = sbr.rel (%p2770) target = $region48
        $region47: #{tpu_custom_call.1} parent=39 // pred_region
          %s2773 = sand.u32 %s116, 1
          %s2774 = scalar_lea.sflag [#allocation3], %s2773
          %s2775 = sand.u32 %s116, 1
          %s2776 = smul.addr %s2775, 2
          %s2777 = scalar_lea.vmem [#allocation2], %s2776
          %2778 = dma.done %s2774, 32
        $region48: #{tpu_custom_call.1} parent=39 // pred_fallthru
          _
      $region40: #{tpu_custom_call.1} parent=5 // pred_fallthru
        _
    $region6: #{tpu_custom_call.1} parent=1 // loop_footer
      %s17 = sadd.s32 1, %s13
    $region7: #{tpu_custom_call.1} parent=1 // loop_footer_branch
      %12 = sbr.rel target = $region3
    $region8: #{tpu_custom_call.1} parent=1 // loop_exit
      _
    %2779 = vsyncpa [#allocation3], 1
    %s2780 = scalar_lea.sflag [#allocation3], 1
    %2781 = vsyncpa %s2780, 1

</llo_original>
